<compile_context>
chip_gen: v5e
topology: v5e:2x2
jax: 0.10.0
libtpu: 0.0.40
codegen_flags: <defaults>
</compile_context>

<pallas_src>
import functools
import math

import jax
import jax.numpy as jnp
from jax.experimental import pallas as pl
from jax.experimental.pallas import tpu as pltpu


# ----------------------------------------------------------------------------
# Fused Fire-block kernel: squeeze 1x1 -> combined (expand1x1 | expand3x3)
# ----------------------------------------------------------------------------
def _fire_kernel(x_ref, wsq_ref, bsq_ref, we_ref, be_ref, o_ref, *, H, W):
    Sq = wsq_ref.shape[1]
    HW = H * W
    PAD = W + 1          # enough zero rows for the (kh-1)*W + (kw-1) shifts

    # ---- squeeze: 1x1 conv + ReLU (bf16 MXU matmul, f32 accumulate/epilogue)
    x = x_ref[0]                                               # (HW, Cin) bf16
    s = jnp.dot(x, wsq_ref[...], preferred_element_type=jnp.float32)
    s = jnp.maximum(s + bsq_ref[...], 0.0)                     # (HW, Sq) f32

    # ---- in-register im2col for the 3x3 expand (padding=1)
    zpad = jnp.zeros((PAD, Sq), jnp.float32)
    s_pad = jnp.concatenate([zpad, s, zpad], axis=0)           # (HW+2*PAD, Sq)

    # Column index of every output pixel; masks kill the W-wraparound rows
    # introduced by the +-1 column shifts (row shifts are handled by zpad).
    col = jax.lax.broadcasted_iota(jnp.int32, (HW, Sq), 0) % W
    keep_l = col > 0            # valid pixels for kw == 0 taps (dw = -1)
    keep_r = col < (W - 1)      # valid pixels for kw == 2 taps (dw = +1)

    taps = []
    for kh in range(3):
        for kw in range(3):
            start = PAD + (kh - 1) * W + (kw - 1)
            tap = s_pad[start:start + HW, :]                   # (HW, Sq) f32
            if kw == 0:
                tap = jnp.where(keep_l, tap, 0.0)
            elif kw == 2:
                tap = jnp.where(keep_r, tap, 0.0)
            taps.append(tap)
    patch = jnp.concatenate(taps, axis=-1).astype(jnp.bfloat16)  # (HW, 9*Sq)

    # ---- single combined expand matmul (expand1x1 folded into centre tap),
    #      bias + ReLU epilogue, one lane-dense store of the channel concat.
    y = jnp.dot(patch, we_ref[...], preferred_element_type=jnp.float32)
    y = jnp.maximum(y + be_ref[...], 0.0)                      # (HW, E1+E3)
    o_ref[0] = y.astype(o_ref.dtype)


@jax.jit
def fire_block(x_nchw, params):
    """FireBlock forward. x: (N, Cin, H, W) f32 -> (N, E1+E3, H, W) f32."""
    wsq, bsq = params["squeeze"]
    w1, b1 = params["expand1x1"]
    w3, b3 = params["expand3x3"]
    N, Cin, H, W = x_nchw.shape
    Sq = wsq.shape[1]
    E1 = w1.shape[1]
    E3 = w3.shape[3]
    HW = H * W

    # NCHW -> NHWC -> (N, H*W, Cin); the reshape is a free bitcast in XLA.
    x = jnp.transpose(x_nchw, (0, 2, 3, 1)).reshape(N, HW, Cin)

    # Combined expand weight (9*Sq, E1+E3): the 1x1 expand occupies the
    # centre-tap (kh=1, kw=1) rows of the E1 columns; the 3x3 weight fills
    # the E3 columns in (kh, kw, Sq) row order, matching the kernel's patch.
    we1 = jnp.zeros((9 * Sq, E1), jnp.float32).at[4 * Sq:5 * Sq].set(w1)
    we3 = w3.reshape(9 * Sq, E3)
    we = jnp.concatenate([we1, we3], axis=1)                   # (9*Sq, E1+E3)
    be = jnp.concatenate([b1, b3]).reshape(1, E1 + E3)

    out = pl.pallas_call(
        functools.partial(_fire_kernel, H=H, W=W),
        out_shape=jax.ShapeDtypeStruct((N, HW, E1 + E3), jnp.float32),
        grid=(N,),
        in_specs=[
            pl.BlockSpec((1, HW, Cin), lambda b: (b, 0, 0)),          # x
            pl.BlockSpec((Cin, Sq), lambda b: (0, 0)),                # W squeeze
            pl.BlockSpec((1, Sq), lambda b: (0, 0)),                  # b squeeze
            pl.BlockSpec((9 * Sq, E1 + E3), lambda b: (0, 0)),        # W expand
            pl.BlockSpec((1, E1 + E3), lambda b: (0, 0)),             # b expand
        ],
        out_specs=pl.BlockSpec((1, HW, E1 + E3), lambda b: (b, 0, 0)),
        compiler_params=pltpu.CompilerParams(
            dimension_semantics=("parallel",)),
    )(
        x.astype(jnp.bfloat16),
        wsq.astype(jnp.bfloat16), bsq.reshape(1, Sq),
        we.astype(jnp.bfloat16), be,
    )

    out = out.reshape(N, H, W, E1 + E3)
    return jnp.transpose(out, (0, 3, 1, 2))                    # NHWC -> NCHW


# ----------------------------------------------------------------------------
# Parameters (deterministic kaiming-style weights) and pure-JAX reference
# ----------------------------------------------------------------------------
def init_fire_params(key, in_channel, squeeze_channel,
                     expand1x1_channel, expand3x3_channel):
    k1, k2, k3, k4 = jax.random.split(key, 4)

    def kaiming(k, shape, fan_in):
        return jax.random.normal(k, shape, jnp.float32) * math.sqrt(2.0 / fan_in)

    wsq = kaiming(k1, (in_channel, squeeze_channel), in_channel)
    w1 = kaiming(k2, (squeeze_channel, expand1x1_channel), squeeze_channel)
    w3 = kaiming(k3, (3, 3, squeeze_channel, expand3x3_channel),
                 9 * squeeze_channel)
    kb1, kb2, kb3 = jax.random.split(k4, 3)
    bsq = 0.05 * jax.random.normal(kb1, (squeeze_channel,), jnp.float32)
    b1 = 0.05 * jax.random.normal(kb2, (expand1x1_channel,), jnp.float32)
    b3 = 0.05 * jax.random.normal(kb3, (expand3x3_channel,), jnp.float32)
    return {"squeeze": (wsq, bsq), "expand1x1": (w1, b1), "expand3x3": (w3, b3)}


def fire_block_reference(x_nchw, params):
    """Pure-JAX reference (operands rounded to bf16 to mirror the MXU inputs)."""
    bf = lambda a: a.astype(jnp.bfloat16).astype(jnp.float32)
    wsq, bsq = params["squeeze"]
    w1, b1 = params["expand1x1"]
    w3, b3 = params["expand3x3"]
    Cin, Sq = wsq.shape
    E1 = w1.shape[1]
    dn = ("NHWC", "HWIO", "NHWC")

    x = jnp.transpose(bf(x_nchw), (0, 2, 3, 1))
    s = jax.lax.conv_general_dilated(
        x, bf(wsq).reshape(1, 1, Cin, Sq), (1, 1), "VALID",
        dimension_numbers=dn)
    s = bf(jnp.maximum(s + bsq, 0.0))          # kernel feeds the expands bf16
    e1 = jax.lax.conv_general_dilated(
        s, bf(w1).reshape(1, 1, Sq, E1), (1, 1), "VALID",
        dimension_numbers=dn)
    e1 = jnp.maximum(e1 + b1, 0.0)
    e3 = jax.lax.conv_general_dilated(
        s, bf(w3), (1, 1), ((1, 1), (1, 1)), dimension_numbers=dn)
    e3 = jnp.maximum(e3 + b3, 0.0)
    out = jnp.concatenate([e1, e3], axis=-1)
    return jnp.transpose(out, (0, 3, 1, 2))


# ----------------------------------------------------------------------------
if __name__ == "__main__":
    key = jax.random.PRNGKey(0)
    k_params, k_x = jax.random.split(key)

    # Small shapes consistent with SqueezeNet's first Fire block.
    N, Cin, H, W = 2, 96, 16, 16
    Sq, E1, E3 = 16, 64, 64

    params = init_fire_params(k_params, Cin, Sq, E1, E3)
    x = jax.random.normal(k_x, (N, Cin, H, W), jnp.float32)

    out = jax.block_until_ready(fire_block(x, params))
    assert out.shape == (N, E1 + E3, H, W)
    assert bool(jnp.all(jnp.isfinite(out)))

    ref = jax.block_until_ready(fire_block_reference(x, params))
    max_err = float(jnp.max(jnp.abs(out - ref)))
    assert max_err < 5e-2, f"max abs error vs reference: {max_err}"

    print("KERNEL_OK")
</pallas_src>

<mosaic_0001>
module attributes {stable_mosaic.version = 11 : i64} {
  func.func @_fire_kernel(%arg0: i32, %arg1: memref<1x256x96xbf16, #tpu.memory_space<vmem>>, %arg2: memref<96x16xbf16, #tpu.memory_space<vmem>>, %arg3: memref<1x16xf32, #tpu.memory_space<vmem>>, %arg4: memref<144x128xbf16, #tpu.memory_space<vmem>>, %arg5: memref<1x128xf32, #tpu.memory_space<vmem>>, %arg6: memref<1x256x128xf32, #tpu.memory_space<vmem>>) attributes {dimension_semantics = [#tpu.dimension_semantics<parallel>], iteration_bounds = array<i64: 2>, scalar_prefetch = 0 : i64, scratch_operands = 0 : i64, tpu.core_type = #tpu.core_type<tc>, window_params = [{transform_indices = @transform_0, window_bounds = array<i64: 1, 256, 96>}, {pipeline_mode = #tpu.pipeline_mode<synchronous>, transform_indices = @transform_1, window_bounds = array<i64: 96, 16>}, {pipeline_mode = #tpu.pipeline_mode<synchronous>, transform_indices = @transform_2, window_bounds = array<i64: 1, 16>}, {pipeline_mode = #tpu.pipeline_mode<synchronous>, transform_indices = @transform_3, window_bounds = array<i64: 144, 128>}, {pipeline_mode = #tpu.pipeline_mode<synchronous>, transform_indices = @transform_4, window_bounds = array<i64: 1, 128>}, {transform_indices = @transform_5, window_bounds = array<i64: 1, 256, 128>}]} {
    %c0 = arith.constant 0 : index
    %c0_0 = arith.constant 0 : index
    %c0_1 = arith.constant 0 : index
    %0 = vector.load %arg1[%c0, %c0_0, %c0_1] : memref<1x256x96xbf16, #tpu.memory_space<vmem>>, vector<1x256x96xbf16>
    %1 = vector.shape_cast %0 : vector<1x256x96xbf16> to vector<256x96xbf16>
    %c0_2 = arith.constant 0 : index
    %c0_3 = arith.constant 0 : index
    %2 = vector.load %arg2[%c0_2, %c0_3] : memref<96x16xbf16, #tpu.memory_space<vmem>>, vector<96x16xbf16>
    %cst = arith.constant dense<0.000000e+00> : vector<256x16xf32>
    %3 = tpu.matmul %1, %2, %cst {dimension_numbers = #tpu.dot_dimension_numbers<[1], [0], [0], [1], [0, 0, 1, 1], [], []>} : vector<256x96xbf16>, vector<96x16xbf16>, vector<256x16xf32> -> vector<256x16xf32>
    %c0_4 = arith.constant 0 : index
    %c0_5 = arith.constant 0 : index
    %4 = vector.load %arg3[%c0_4, %c0_5] : memref<1x16xf32, #tpu.memory_space<vmem>>, vector<1x16xf32>
    %5 = vector.broadcast %4 : vector<1x16xf32> to vector<256x16xf32>
    %6 = arith.addf %3, %5 : vector<256x16xf32>
    %cst_6 = arith.constant 0.000000e+00 : f32
    %7 = vector.broadcast %cst_6 : f32 to vector<256x16xf32>
    %8 = arith.maximumf %6, %7 : vector<256x16xf32>
    %cst_7 = arith.constant 0.000000e+00 : f32
    %9 = vector.broadcast %cst_7 : f32 to vector<17x16xf32>
    %10 = tpu.concatenate %9, %8, %9 in 0 : vector<17x16xf32>, vector<256x16xf32>, vector<17x16xf32> -> vector<290x16xf32>
    %11 = tpu.iota {dimensions = array<i32: 0>} : vector<256x16xi32>
    %c16_i32 = arith.constant 16 : i32
    %c0_i32 = arith.constant 0 : i32
    %12 = arith.cmpi eq, %c16_i32, %c0_i32 : i32
    %c1_i32 = arith.constant 1 : i32
    %13 = arith.select %12, %c1_i32, %c16_i32 : i32
    %14 = vector.broadcast %13 : i32 to vector<256x16xi32>
    %15 = arith.remsi %11, %14 : vector<256x16xi32>
    %c0_i32_8 = arith.constant 0 : i32
    %16 = vector.broadcast %c0_i32_8 : i32 to vector<256x16xi32>
    %17 = arith.cmpi ne, %15, %16 : vector<256x16xi32>
    %c0_i32_9 = arith.constant 0 : i32
    %18 = vector.broadcast %c0_i32_9 : i32 to vector<256x16xi32>
    %19 = arith.cmpi slt, %15, %18 : vector<256x16xi32>
    %c0_i32_10 = arith.constant 0 : i32
    %20 = arith.cmpi slt, %13, %c0_i32_10 : i32
    %21 = vector.broadcast %20 : i1 to vector<256x16xi1>
    %22 = vector.broadcast %21 : vector<256x16xi1> to vector<256x16xi1>
    %23 = arith.xori %19, %22 : vector<256x16xi1>
    %24 = arith.andi %23, %17 : vector<256x16xi1>
    %25 = vector.broadcast %13 : i32 to vector<256x16xi32>
    %26 = arith.addi %15, %25 : vector<256x16xi32>
    %27 = arith.select %24, %26, %15 : vector<256x16xi1>, vector<256x16xi32>
    %c0_i32_11 = arith.constant 0 : i32
    %28 = vector.broadcast %c0_i32_11 : i32 to vector<256x16xi32>
    %29 = arith.cmpi sgt, %27, %28 : vector<256x16xi32>
    %c15_i32 = arith.constant 15 : i32
    %30 = vector.broadcast %c15_i32 : i32 to vector<256x16xi32>
    %31 = arith.cmpi slt, %27, %30 : vector<256x16xi32>
    %32 = vector.extract_strided_slice %10 {offsets = [0, 0], sizes = [256, 16], strides = [1, 1]} : vector<290x16xf32> to vector<256x16xf32>
    %cst_12 = arith.constant 0.000000e+00 : f32
    %33 = vector.broadcast %cst_12 : f32 to vector<256x16xf32>
    %34 = arith.select %29, %32, %33 : vector<256x16xi1>, vector<256x16xf32>
    %35 = vector.extract_strided_slice %10 {offsets = [1, 0], sizes = [256, 16], strides = [1, 1]} : vector<290x16xf32> to vector<256x16xf32>
    %36 = vector.extract_strided_slice %10 {offsets = [2, 0], sizes = [256, 16], strides = [1, 1]} : vector<290x16xf32> to vector<256x16xf32>
    %cst_13 = arith.constant 0.000000e+00 : f32
    %37 = vector.broadcast %cst_13 : f32 to vector<256x16xf32>
    %38 = arith.select %31, %36, %37 : vector<256x16xi1>, vector<256x16xf32>
    %39 = vector.extract_strided_slice %10 {offsets = [16, 0], sizes = [256, 16], strides = [1, 1]} : vector<290x16xf32> to vector<256x16xf32>
    %cst_14 = arith.constant 0.000000e+00 : f32
    %40 = vector.broadcast %cst_14 : f32 to vector<256x16xf32>
    %41 = arith.select %29, %39, %40 : vector<256x16xi1>, vector<256x16xf32>
    %42 = vector.extract_strided_slice %10 {offsets = [17, 0], sizes = [256, 16], strides = [1, 1]} : vector<290x16xf32> to vector<256x16xf32>
    %43 = vector.extract_strided_slice %10 {offsets = [18, 0], sizes = [256, 16], strides = [1, 1]} : vector<290x16xf32> to vector<256x16xf32>
    %cst_15 = arith.constant 0.000000e+00 : f32
    %44 = vector.broadcast %cst_15 : f32 to vector<256x16xf32>
    %45 = arith.select %31, %43, %44 : vector<256x16xi1>, vector<256x16xf32>
    %46 = vector.extract_strided_slice %10 {offsets = [32, 0], sizes = [256, 16], strides = [1, 1]} : vector<290x16xf32> to vector<256x16xf32>
    %cst_16 = arith.constant 0.000000e+00 : f32
    %47 = vector.broadcast %cst_16 : f32 to vector<256x16xf32>
    %48 = arith.select %29, %46, %47 : vector<256x16xi1>, vector<256x16xf32>
    %49 = vector.extract_strided_slice %10 {offsets = [33, 0], sizes = [256, 16], strides = [1, 1]} : vector<290x16xf32> to vector<256x16xf32>
    %50 = vector.extract_strided_slice %10 {offsets = [34, 0], sizes = [256, 16], strides = [1, 1]} : vector<290x16xf32> to vector<256x16xf32>
    %cst_17 = arith.constant 0.000000e+00 : f32
    %51 = vector.broadcast %cst_17 : f32 to vector<256x16xf32>
    %52 = arith.select %31, %50, %51 : vector<256x16xi1>, vector<256x16xf32>
    %53 = tpu.concatenate %34, %35, %38, %41, %42, %45, %48, %49, %52 in 1 : vector<256x16xf32>, vector<256x16xf32>, vector<256x16xf32>, vector<256x16xf32>, vector<256x16xf32>, vector<256x16xf32>, vector<256x16xf32>, vector<256x16xf32>, vector<256x16xf32> -> vector<256x144xf32>
    %54 = arith.truncf %53 : vector<256x144xf32> to vector<256x144xbf16>
    %c0_18 = arith.constant 0 : index
    %c0_19 = arith.constant 0 : index
    %55 = vector.load %arg4[%c0_18, %c0_19] : memref<144x128xbf16, #tpu.memory_space<vmem>>, vector<144x128xbf16>
    %cst_20 = arith.constant dense<0.000000e+00> : vector<256x128xf32>
    %56 = tpu.matmul %54, %55, %cst_20 {dimension_numbers = #tpu.dot_dimension_numbers<[1], [0], [0], [1], [0, 0, 1, 1], [], []>} : vector<256x144xbf16>, vector<144x128xbf16>, vector<256x128xf32> -> vector<256x128xf32>
    %c0_21 = arith.constant 0 : index
    %c0_22 = arith.constant 0 : index
    %57 = vector.load %arg5[%c0_21, %c0_22] : memref<1x128xf32, #tpu.memory_space<vmem>>, vector<1x128xf32>
    %58 = vector.broadcast %57 : vector<1x128xf32> to vector<256x128xf32>
    %59 = arith.addf %56, %58 : vector<256x128xf32>
    %cst_23 = arith.constant 0.000000e+00 : f32
    %60 = vector.broadcast %cst_23 : f32 to vector<256x128xf32>
    %61 = arith.maximumf %59, %60 : vector<256x128xf32>
    %c0_24 = arith.constant 0 : index
    %c0_25 = arith.constant 0 : index
    %c0_26 = arith.constant 0 : index
    %62 = vector.load %arg6[%c0_24, %c0_25, %c0_26] : memref<1x256x128xf32, #tpu.memory_space<vmem>>, vector<1x256x128xf32>
    %63 = vector.shape_cast %62 : vector<1x256x128xf32> to vector<256x128xf32>
    %64 = vector.shape_cast %61 : vector<256x128xf32> to vector<1x256x128xf32>
    tpu.vector_store %arg6[%c0_24, %c0_25, %c0_26], %64 {strides = array<i32>} : memref<1x256x128xf32, #tpu.memory_space<vmem>>, vector<1x256x128xf32>,
    return
  }
  func.func @transform_0(%arg0: i32) -> (i32, i32, i32) {
    %c0_i32 = arith.constant 0 : i32
    %c0_i32_0 = arith.constant 0 : i32
    %c0_i32_1 = arith.constant 0 : i32
    return %arg0, %c0_i32, %c0_i32_0 : i32, i32, i32
  }
  func.func @transform_1(%arg0: i32) -> (i32, i32) {
    %c0_i32 = arith.constant 0 : i32
    %c0_i32_0 = arith.constant 0 : i32
    %c0_i32_1 = arith.constant 0 : i32
    return %c0_i32, %c0_i32_0 : i32, i32
  }
  func.func @transform_2(%arg0: i32) -> (i32, i32) {
    %c0_i32 = arith.constant 0 : i32
    %c0_i32_0 = arith.constant 0 : i32
    %c0_i32_1 = arith.constant 0 : i32
    return %c0_i32, %c0_i32_0 : i32, i32
  }
  func.func @transform_3(%arg0: i32) -> (i32, i32) {
    %c0_i32 = arith.constant 0 : i32
    %c0_i32_0 = arith.constant 0 : i32
    %c0_i32_1 = arith.constant 0 : i32
    return %c0_i32, %c0_i32_0 : i32, i32
  }
  func.func @transform_4(%arg0: i32) -> (i32, i32) {
    %c0_i32 = arith.constant 0 : i32
    %c0_i32_0 = arith.constant 0 : i32
    %c0_i32_1 = arith.constant 0 : i32
    return %c0_i32, %c0_i32_0 : i32, i32
  }
  func.func @transform_5(%arg0: i32) -> (i32, i32, i32) {
    %c0_i32 = arith.constant 0 : i32
    %c0_i32_0 = arith.constant 0 : i32
    %c0_i32_1 = arith.constant 0 : i32
    return %arg0, %c0_i32, %c0_i32_0 : i32, i32, i32
  }
}

</mosaic_0001>

<llo_original>
// kernel: fire_block.1
$region0: #{fire_block.1}
  #allocation0 [shape = 'u32[]', space=smem, size = 0x4, offset = 0x4, fixed_abs, tag = 'smem constant byte address 0x4 - core index']
  #allocation1 [shape = 'u32[72,128]{1,0:T(1,128)}', space=vmem, size = 0x9000, scoped, tag = 'internal scratch']
  %s0 = inlined_call_operand.vmem [shape: bf16[2,256,96], index: 0, kind: input, shape index: {}]
  %s1 = inlined_call_operand.vmem [shape: bf16[96,16], index: 1, kind: input, shape index: {}]
  %s2 = inlined_call_operand.vmem [shape: f32[1,16], index: 2, kind: input, shape index: {}]
  %s3 = inlined_call_operand.vmem [shape: bf16[144,128], index: 3, kind: input, shape index: {}]
  %s4 = inlined_call_operand.vmem [shape: f32[1,128], index: 4, kind: input, shape index: {}]
  %s5 = inlined_call_operand.hbm [shape: f32[2,256,128], index: 5, kind: output, shape index: {}]
  %s6 = sld [smem:[#allocation0]]
  $region53: #{fire_block.1} parent=0
    _
  %s8 = ssub.s32 1, %s6
  %s9 = scalar_select 0, %s8, %s6
  $region1: #{fire_block.1} parent=0
    #allocation2 [shape = 'u8[262144]{0}', space=vmem, size = 0x40000, scoped, tag = 'output window, operand 0']
    #allocation3 [shape = 's32[2]{0}', space=sflag, size = 0x8, scoped, tag = 'scoped memory for fire_block.1']
    %10 = vsyncpa [#allocation3], 0
    %s11 = scalar_lea.sflag [#allocation3], 1
    %12 = vsyncpa %s11, 0
    loop: start=0, step=1, limit=4
    $region2: #{fire_block.1} parent=1 // loop_pre_header
      _
    $region3: #{fire_block.1} parent=1 // loop_header
      %s14 = sphi 0, %s18
      %p15 = scmp.ge.s32.totalorder %s14, 4
      %s24 = sphi 0, %s26
      %s27 = sphi 0, %s24
      %s28 = sphi 0, %s27
      %s44 = sphi 0, %s28
      %s48 = sphi 0, %s48
      %s50 = sphi 0, %s48
      %s51 = sphi 0, %s50
      %s65 = sphi 0, %s51
      %s69 = sphi 0, %s69
      %s71 = sphi 0, %s69
      %s72 = sphi 0, %s71
      %s86 = sphi 0, %s72
      %s90 = sphi 0, %s90
      %s92 = sphi 0, %s90
      %s93 = sphi 0, %s92
      %s107 = sphi 0, %s93
      %s111 = sphi 0, %s111
      %s113 = sphi 0, %s111
      %s114 = sphi 0, %s113
      %s128 = sphi 0, %s114
      %s134 = sphi 0, %s136
      %s137 = sphi 0, %s134
      %s138 = sphi 0, %s137
      %s154 = sphi 0, %s138
    $region4: #{fire_block.1} parent=1 // loop_header_branch
      %17 = sbr.rel (%p15) target = $region8
    $region5: #{fire_block.1} parent=1 // loop_body
      %s19 = ssub.s32 %s14, 1
      %s20 = ssub.s32 %s14, 2
      %s21 = sadd.s32 %s14, 1
      %s22 = ssub.s32 %s14, %s21
      %p23 = scmp.eq.s32.totalorder %s22, 0
      %s25 = sadd.s32 %s24, 1
      %s26 = scalar_select %p23, %s24, %s25
      %p29 = pneg %p23
      %p30 = scmp.eq.s32.totalorder %s14, 1
      %p31 = por %p29, %p30
      %p32 = scmp.ne.s32.totalorder %s24, %s27
      %p33 = scmp.eq.s32.totalorder %s14, 0
      %p34 = por %p32, %p33
      %p35 = scmp.ne.s32.totalorder %s24, %s27
      %p36 = scmp.eq.s32.totalorder %s19, 1
      %p37 = por %p35, %p36
      %p38 = scmp.ne.s32.totalorder %s27, %s28
      %p39 = scmp.eq.s32.totalorder %s19, 0
      %p40 = por %p38, %p39
      %p41 = scmp.ne.s32.totalorder %s27, %s28
      %p42 = scmp.eq.s32.totalorder %s20, 1
      %p43 = por %p41, %p42
      %p45 = scmp.ne.s32.totalorder %s28, %s44
      %p46 = scmp.eq.s32.totalorder %s20, 0
      %p47 = por %p45, %p46
      %s49 = sadd.s32 %s48, 1
      %p52 = scmp.eq.s32.totalorder %s14, 1
      %p53 = scmp.ne.s32.totalorder %s48, %s50
      %p54 = scmp.eq.s32.totalorder %s14, 0
      %p55 = por %p53, %p54
      %p56 = scmp.ne.s32.totalorder %s48, %s50
      %p57 = scmp.eq.s32.totalorder %s19, 1
      %p58 = por %p56, %p57
      %p59 = scmp.ne.s32.totalorder %s50, %s51
      %p60 = scmp.eq.s32.totalorder %s19, 0
      %p61 = por %p59, %p60
      %p62 = scmp.ne.s32.totalorder %s50, %s51
      %p63 = scmp.eq.s32.totalorder %s20, 1
      %p64 = por %p62, %p63
      %p66 = scmp.ne.s32.totalorder %s51, %s65
      %p67 = scmp.eq.s32.totalorder %s20, 0
      %p68 = por %p66, %p67
      %s70 = sadd.s32 %s69, 1
      %p73 = scmp.eq.s32.totalorder %s14, 1
      %p74 = scmp.ne.s32.totalorder %s69, %s71
      %p75 = scmp.eq.s32.totalorder %s14, 0
      %p76 = por %p74, %p75
      %p77 = scmp.ne.s32.totalorder %s69, %s71
      %p78 = scmp.eq.s32.totalorder %s19, 1
      %p79 = por %p77, %p78
      %p80 = scmp.ne.s32.totalorder %s71, %s72
      %p81 = scmp.eq.s32.totalorder %s19, 0
      %p82 = por %p80, %p81
      %p83 = scmp.ne.s32.totalorder %s71, %s72
      %p84 = scmp.eq.s32.totalorder %s20, 1
      %p85 = por %p83, %p84
      %p87 = scmp.ne.s32.totalorder %s72, %s86
      %p88 = scmp.eq.s32.totalorder %s20, 0
      %p89 = por %p87, %p88
      %s91 = sadd.s32 %s90, 1
      %p94 = scmp.eq.s32.totalorder %s14, 1
      %p95 = scmp.ne.s32.totalorder %s90, %s92
      %p96 = scmp.eq.s32.totalorder %s14, 0
      %p97 = por %p95, %p96
      %p98 = scmp.ne.s32.totalorder %s90, %s92
      %p99 = scmp.eq.s32.totalorder %s19, 1
      %p100 = por %p98, %p99
      %p101 = scmp.ne.s32.totalorder %s92, %s93
      %p102 = scmp.eq.s32.totalorder %s19, 0
      %p103 = por %p101, %p102
      %p104 = scmp.ne.s32.totalorder %s92, %s93
      %p105 = scmp.eq.s32.totalorder %s20, 1
      %p106 = por %p104, %p105
      %p108 = scmp.ne.s32.totalorder %s93, %s107
      %p109 = scmp.eq.s32.totalorder %s20, 0
      %p110 = por %p108, %p109
      %s112 = sadd.s32 %s111, 1
      %p115 = scmp.eq.s32.totalorder %s14, 1
      %p116 = scmp.ne.s32.totalorder %s111, %s113
      %p117 = scmp.eq.s32.totalorder %s14, 0
      %p118 = por %p116, %p117
      %p119 = scmp.ne.s32.totalorder %s111, %s113
      %p120 = scmp.eq.s32.totalorder %s19, 1
      %p121 = por %p119, %p120
      %p122 = scmp.ne.s32.totalorder %s113, %s114
      %p123 = scmp.eq.s32.totalorder %s19, 0
      %p124 = por %p122, %p123
      %p125 = scmp.ne.s32.totalorder %s113, %s114
      %p126 = scmp.eq.s32.totalorder %s20, 1
      %p127 = por %p125, %p126
      %p129 = scmp.ne.s32.totalorder %s114, %s128
      %p130 = scmp.eq.s32.totalorder %s20, 0
      %p131 = por %p129, %p130
      %s132 = ssub.s32 %s14, %s21
      %p133 = scmp.eq.s32.totalorder %s132, 0
      %s135 = sadd.s32 %s134, 1
      %s136 = scalar_select %p133, %s134, %s135
      %p139 = pneg %p133
      %p140 = scmp.eq.s32.totalorder %s14, 1
      %p141 = por %p139, %p140
      %p142 = scmp.ne.s32.totalorder %s134, %s137
      %p143 = scmp.eq.s32.totalorder %s14, 0
      %p144 = por %p142, %p143
      %p145 = scmp.ne.s32.totalorder %s134, %s137
      %p146 = scmp.eq.s32.totalorder %s19, 1
      %p147 = por %p145, %p146
      %p148 = scmp.ne.s32.totalorder %s137, %s138
      %p149 = scmp.eq.s32.totalorder %s19, 0
      %p150 = por %p148, %p149
      %p151 = scmp.ne.s32.totalorder %s137, %s138
      %p152 = scmp.eq.s32.totalorder %s20, 1
      %p153 = por %p151, %p152
      %p155 = scmp.ne.s32.totalorder %s138, %s154
      %p156 = scmp.eq.s32.totalorder %s20, 0
      %p157 = por %p155, %p156
      %p158 = scmp.le.s32.totalorder 1, %s14
      %p159 = scmp.lt.s32.totalorder %s14, 3
      %p160 = pnand %p158, %p159
      %p161 = pneg %p160
      // Predicated region
      $region9: #{fire_block.1} parent=5 // pred_check
        _
      $region10: #{fire_block.1} parent=5 // pred_check_branch
        %163 = sbr.rel (%p160) target = $region12
      $region11: #{fire_block.1} parent=5 // pred_region
        %s164 = ssub.s32 %s14, 1
        // Predicated region
        $region13: #{fire_block.1} parent=11 // pred_check
          %p165 = pneg %p61
        $region14: #{fire_block.1} parent=11 // pred_check_branch
          %167 = sbr.rel (%p165) target = $region16
        $region15: #{fire_block.1} parent=11 // pred_region
          _
        $region16: #{fire_block.1} parent=11 // pred_fallthru
          _
        // Predicated region
        $region17: #{fire_block.1} parent=11 // pred_check
          %p168 = pneg %p82
        $region18: #{fire_block.1} parent=11 // pred_check_branch
          %170 = sbr.rel (%p168) target = $region20
        $region19: #{fire_block.1} parent=11 // pred_region
          _
        $region20: #{fire_block.1} parent=11 // pred_fallthru
          _
        // Predicated region
        $region21: #{fire_block.1} parent=11 // pred_check
          %p171 = pneg %p103
        $region22: #{fire_block.1} parent=11 // pred_check_branch
          %173 = sbr.rel (%p171) target = $region24
        $region23: #{fire_block.1} parent=11 // pred_region
          _
        $region24: #{fire_block.1} parent=11 // pred_fallthru
          _
        // Predicated region
        $region25: #{fire_block.1} parent=11 // pred_check
          %p174 = pneg %p124
        $region26: #{fire_block.1} parent=11 // pred_check_branch
          %176 = sbr.rel (%p174) target = $region28
        $region27: #{fire_block.1} parent=11 // pred_region
          _
        $region28: #{fire_block.1} parent=11 // pred_fallthru
          _
      $region12: #{fire_block.1} parent=5 // pred_fallthru
        _
      %p177 = scmp.lt.s32.totalorder %s14, 2
      // Predicated region
      $region29: #{fire_block.1} parent=5 // pred_check
        %p178 = pneg %p177
      $region30: #{fire_block.1} parent=5 // pred_check_branch
        %180 = sbr.rel (%p178) target = $region32
      $region31: #{fire_block.1} parent=5 // pred_region
        // Predicated region
        $region33: #{fire_block.1} parent=31 // pred_check
          %p181 = pneg %p34
        $region34: #{fire_block.1} parent=31 // pred_check_branch
          %183 = sbr.rel (%p181) target = $region36
        $region35: #{fire_block.1} parent=31 // pred_region
          %p184 = scmp.lt.s32.totalorder %s14, 1
          %s185 = scalar_select %p184, %s14, 1
          %s186 = smul.addr %s185, 32
          %s187 = smul.addr %s186, 4
          %s188 = scalar_lea.vmem %s0, %s187
        $region36: #{fire_block.1} parent=31 // pred_fallthru
          _
      $region32: #{fire_block.1} parent=5 // pred_fallthru
        _
      %p189 = scmp.le.s32.totalorder 1, %s14
      %p190 = scmp.lt.s32.totalorder %s14, 3
      %p191 = pnand %p189, %p190
      %p192 = pneg %p191
      // Predicated region
      $region37: #{fire_block.1} parent=5 // pred_check
        _
      $region38: #{fire_block.1} parent=5 // pred_check_branch
        %194 = sbr.rel (%p191) target = $region40
      $region39: #{fire_block.1} parent=5 // pred_region
        %s195 = ssub.s32 %s14, 1
        %p196 = scmp.lt.s32.totalorder %s19, 1
        %s197 = scalar_select %p196, %s19, 1
        %s198 = smul.addr %s197, 32
        %s199 = smul.addr %s198, 4
        %s200 = scalar_lea.vmem %s0, %s199
        %p201 = pneg %p40
        %p202 = pneg %p37
        %p203 = pneg %p61
        %p204 = pneg %p58
        %p205 = pneg %p82
        %p206 = pneg %p79
        %p207 = pneg %p103
        %p208 = pneg %p100
        %p209 = pneg %p124
        %p210 = pneg %p121
        %p211 = pneg %p150
        %p212 = pneg %p147
        %s213 = sand.u32 %s137, 1
        %s214 = scalar_lea.sflag [#allocation3], %s213
        %s215 = sand.u32 %s137, 1
        %s216 = smul.addr %s215, 256
        %s217 = scalar_lea.vmem [#allocation2], %s216
        %p218 = scmp.lt.s32.totalorder %s19, 1
        %s219 = scalar_select %p218, %s19, 1
        %s220 = smul.addr %s219, 32
        %s221 = smul.addr %s220, 4
        %s222 = scalar_lea.vmem %s0, %s221
        %v224 = vld [vmem:[%s222] sm:$0xf]
        %v225 = vld [vmem:[%s222 + $0x4] sm:$0xf]
        %v226 = vld [vmem:[%s222 + $0x8] sm:$0xf]
        %v227 = vld [vmem:[%s222 + $0xc] sm:$0xf]
        %v228 = vld [vmem:[%s222 + $0x10] sm:$0xf]
        %v229 = vld [vmem:[%s222 + $0x14] sm:$0xf]
        %v230 = vld [vmem:[%s222 + $0x18] sm:$0xf]
        %v231 = vld [vmem:[%s222 + $0x1c] sm:$0xf]
        %v232 = vld [vmem:[%s222 + $0x20] sm:$0xf]
        %v233 = vld [vmem:[%s222 + $0x24] sm:$0xf]
        %v234 = vld [vmem:[%s222 + $0x28] sm:$0xf]
        %v235 = vld [vmem:[%s222 + $0x2c] sm:$0xf]
        %v236 = vld [vmem:[%s222 + $0x30] sm:$0xf]
        %v237 = vld [vmem:[%s222 + $0x34] sm:$0xf]
        %v238 = vld [vmem:[%s222 + $0x38] sm:$0xf]
        %v239 = vld [vmem:[%s222 + $0x3c] sm:$0xf]
        %v240 = vld [vmem:[%s222 + $0x40] sm:$0xf]
        %v241 = vld [vmem:[%s222 + $0x44] sm:$0xf]
        %v242 = vld [vmem:[%s222 + $0x48] sm:$0xf]
        %v243 = vld [vmem:[%s222 + $0x4c] sm:$0xf]
        %v244 = vld [vmem:[%s222 + $0x50] sm:$0xf]
        %v245 = vld [vmem:[%s222 + $0x54] sm:$0xf]
        %v246 = vld [vmem:[%s222 + $0x58] sm:$0xf]
        %v247 = vld [vmem:[%s222 + $0x5c] sm:$0xf]
        %v248 = vld [vmem:[%s222 + $0x60] sm:$0xf]
        %v249 = vld [vmem:[%s222 + $0x64] sm:$0xf]
        %v250 = vld [vmem:[%s222 + $0x68] sm:$0xf]
        %v251 = vld [vmem:[%s222 + $0x6c] sm:$0xf]
        %v252 = vld [vmem:[%s222 + $0x70] sm:$0xf]
        %v253 = vld [vmem:[%s222 + $0x74] sm:$0xf]
        %v254 = vld [vmem:[%s222 + $0x78] sm:$0xf]
        %v255 = vld [vmem:[%s222 + $0x7c] sm:$0xf]
        %v256 = vld [vmem:[%s1] sm:$0xf]
        %v257 = vld [vmem:[%s1 + $0x4] sm:$0xf]
        %v258 = vld [vmem:[%s1 + $0x8] sm:$0xf]
        %v259 = vld [vmem:[%s1 + $0xc] sm:$0xf]
        %v260 = vld [vmem:[%s1 + $0x10] sm:$0xf]
        %v261 = vld [vmem:[%s1 + $0x14] sm:$0xf]
        %v262 = vld [vmem:[%s1 + $0x18] sm:$0xf]
        %v263 = vld [vmem:[%s1 + $0x1c] sm:$0xf]
        %v264 = vld [vmem:[%s1 + $0x20] sm:$0xf]
        %v265 = vld [vmem:[%s1 + $0x24] sm:$0xf]
        %v266 = vld [vmem:[%s1 + $0x28] sm:$0xf]
        %v267 = vld [vmem:[%s1 + $0x2c] sm:$0xf]
        %v268 = vld [vmem:[%s2] sm:$0x1]
        %v270 = vperm.slane %v268, 0
        %v304 = vunpack.c.l.b16 %v224
        %v305 = vunpack.c.l.b16 %v225
        %v306 = vunpack.c.l.b16 %v226
        %v307 = vunpack.c.l.b16 %v227
        %v308 = vunpack.c.l.b16 %v228
        %v309 = vunpack.c.l.b16 %v229
        %v310 = vunpack.c.l.b16 %v230
        %v311 = vunpack.c.l.b16 %v231
        %v312 = vunpack.c.l.b16 %v232
        %v313 = vunpack.c.l.b16 %v233
        %v314 = vunpack.c.l.b16 %v234
        %v315 = vunpack.c.l.b16 %v235
        %v316 = vunpack.c.l.b16 %v236
        %v317 = vunpack.c.l.b16 %v237
        %v318 = vunpack.c.l.b16 %v238
        %v319 = vunpack.c.l.b16 %v239
        %v320 = vunpack.c.l.b16 %v240
        %v321 = vunpack.c.l.b16 %v241
        %v322 = vunpack.c.l.b16 %v242
        %v323 = vunpack.c.l.b16 %v243
        %v324 = vunpack.c.l.b16 %v244
        %v325 = vunpack.c.l.b16 %v245
        %v326 = vunpack.c.l.b16 %v246
        %v327 = vunpack.c.l.b16 %v247
        %v328 = vunpack.c.l.b16 %v248
        %v329 = vunpack.c.l.b16 %v249
        %v330 = vunpack.c.l.b16 %v250
        %v331 = vunpack.c.l.b16 %v251
        %v332 = vunpack.c.l.b16 %v252
        %v333 = vunpack.c.l.b16 %v253
        %v334 = vunpack.c.l.b16 %v254
        %v335 = vunpack.c.l.b16 %v255
        %v336 = vpack.c.b16 %v305, %v304
        %v337 = vpack.c.b16 %v307, %v306
        %v338 = vpack.c.b16 %v309, %v308
        %v339 = vpack.c.b16 %v311, %v310
        %v340 = vpack.c.b16 %v313, %v312
        %v341 = vpack.c.b16 %v315, %v314
        %v342 = vpack.c.b16 %v317, %v316
        %v343 = vpack.c.b16 %v319, %v318
        %v344 = vpack.c.b16 %v321, %v320
        %v345 = vpack.c.b16 %v323, %v322
        %v346 = vpack.c.b16 %v325, %v324
        %v347 = vpack.c.b16 %v327, %v326
        %v348 = vpack.c.b16 %v329, %v328
        %v349 = vpack.c.b16 %v331, %v330
        %v350 = vpack.c.b16 %v333, %v332
        %v351 = vpack.c.b16 %v335, %v334
        %v364 = vunpack.c.l.b16 %v256
        %v365 = vunpack.c.l.b16 %v257
        %v366 = vunpack.c.l.b16 %v258
        %v367 = vunpack.c.l.b16 %v259
        %v368 = vunpack.c.l.b16 %v260
        %v369 = vunpack.c.l.b16 %v261
        %v370 = vunpack.c.l.b16 %v262
        %v371 = vunpack.c.l.b16 %v263
        %v372 = vunpack.c.l.b16 %v264
        %v373 = vunpack.c.l.b16 %v265
        %v374 = vunpack.c.l.b16 %v266
        %v375 = vunpack.c.l.b16 %v267
        %v376 = vpack.c.b16 %v365, %v364
        %v377 = vpack.c.b16 %v367, %v366
        %v378 = vpack.c.b16 %v369, %v368
        %v379 = vpack.c.b16 %v371, %v370
        %v380 = vpack.c.b16 %v373, %v372
        %v381 = vpack.c.b16 %v375, %v374
        %vm388 = vcmask 785408
        %v390 = vsel %vm388, %v336, 0
        %v393 = vsel %vm388, %v337, 0
        %v396 = vsel %vm388, %v338, 0
        %v399 = vsel %vm388, %v339, 0
        %v402 = vsel %vm388, %v340, 0
        %v405 = vsel %vm388, %v341, 0
        %v408 = vsel %vm388, %v342, 0
        %v411 = vsel %vm388, %v343, 0
        %v414 = vsel %vm388, %v344, 0
        %v417 = vsel %vm388, %v345, 0
        %v420 = vsel %vm388, %v346, 0
        %v423 = vsel %vm388, %v347, 0
        %v426 = vsel %vm388, %v348, 0
        %v429 = vsel %vm388, %v349, 0
        %v432 = vsel %vm388, %v350, 0
        %v435 = vsel %vm388, %v351, 0
        %437 = vmatpush.bf16.msra.mxu0 0
        %438 = vmatpush.bf16.msra.mxu0 0
        %439 = vmatpush.bf16.msra.mxu0 %v381
        %440 = vmatpush.bf16.msra.mxu0 %v380
        %441 = vmatpush.bf16.msra.mxu0 %v379
        %442 = vmatpush.bf16.msra.mxu0 %v378
        %443 = vmatpush.bf16.msra.mxu0 %v377
        %444 = vmatpush.bf16.msra.mxu0 %v376
        %445 = vmatmul.bf16.gmra.mxu0 %v390
        %v446 = vpop.f32.mrf.mxu0
        %v447 = vadd.f32 %v270, %v446
        %v448 = vpop.f32.mrf.mxu0
        %v449 = vadd.f32 %v270, %v448
        %450 = vmatmul.bf16.gmra.mxu0 %v393
        %v451 = vpop.f32.mrf.mxu0
        %v452 = vadd.f32 %v270, %v451
        %v453 = vpop.f32.mrf.mxu0
        %v454 = vadd.f32 %v270, %v453
        %455 = vmatmul.bf16.gmra.mxu0 %v396
        %v456 = vpop.f32.mrf.mxu0
        %v457 = vadd.f32 %v270, %v456
        %v458 = vpop.f32.mrf.mxu0
        %v459 = vadd.f32 %v270, %v458
        %460 = vmatmul.bf16.gmra.mxu0 %v399
        %v461 = vpop.f32.mrf.mxu0
        %v462 = vadd.f32 %v270, %v461
        %v463 = vpop.f32.mrf.mxu0
        %v464 = vadd.f32 %v270, %v463
        %465 = vmatmul.bf16.gmra.mxu0 %v402
        %v466 = vpop.f32.mrf.mxu0
        %v467 = vadd.f32 %v270, %v466
        %v468 = vpop.f32.mrf.mxu0
        %v469 = vadd.f32 %v270, %v468
        %470 = vmatmul.bf16.gmra.mxu0 %v405
        %v471 = vpop.f32.mrf.mxu0
        %v472 = vadd.f32 %v270, %v471
        %v473 = vpop.f32.mrf.mxu0
        %v474 = vadd.f32 %v270, %v473
        %475 = vmatmul.bf16.gmra.mxu0 %v408
        %v476 = vpop.f32.mrf.mxu0
        %v477 = vadd.f32 %v270, %v476
        %v478 = vpop.f32.mrf.mxu0
        %v479 = vadd.f32 %v270, %v478
        %480 = vmatmul.bf16.gmra.mxu0 %v411
        %v481 = vpop.f32.mrf.mxu0
        %v482 = vadd.f32 %v270, %v481
        %v483 = vpop.f32.mrf.mxu0
        %v484 = vadd.f32 %v270, %v483
        %485 = vmatmul.bf16.gmra.mxu0 %v414
        %v486 = vpop.f32.mrf.mxu0
        %v487 = vadd.f32 %v270, %v486
        %v488 = vpop.f32.mrf.mxu0
        %v489 = vadd.f32 %v270, %v488
        %490 = vmatmul.bf16.gmra.mxu0 %v417
        %v491 = vpop.f32.mrf.mxu0
        %v492 = vadd.f32 %v270, %v491
        %v493 = vpop.f32.mrf.mxu0
        %v494 = vadd.f32 %v270, %v493
        %495 = vmatmul.bf16.gmra.mxu0 %v420
        %v496 = vpop.f32.mrf.mxu0
        %v497 = vadd.f32 %v270, %v496
        %v498 = vpop.f32.mrf.mxu0
        %v499 = vadd.f32 %v270, %v498
        %500 = vmatmul.bf16.gmra.mxu0 %v423
        %v501 = vpop.f32.mrf.mxu0
        %v502 = vadd.f32 %v270, %v501
        %v503 = vpop.f32.mrf.mxu0
        %v504 = vadd.f32 %v270, %v503
        %505 = vmatmul.bf16.gmra.mxu0 %v426
        %v506 = vpop.f32.mrf.mxu0
        %v507 = vadd.f32 %v270, %v506
        %v508 = vpop.f32.mrf.mxu0
        %v509 = vadd.f32 %v270, %v508
        %510 = vmatmul.bf16.gmra.mxu0 %v429
        %v511 = vpop.f32.mrf.mxu0
        %v512 = vadd.f32 %v270, %v511
        %v513 = vpop.f32.mrf.mxu0
        %v514 = vadd.f32 %v270, %v513
        %515 = vmatmul.bf16.gmra.mxu0 %v432
        %v516 = vpop.f32.mrf.mxu0
        %v517 = vadd.f32 %v270, %v516
        %v518 = vpop.f32.mrf.mxu0
        %v519 = vadd.f32 %v270, %v518
        %520 = vmatmul.bf16.gmra.mxu0 %v435
        %v521 = vpop.f32.mrf.mxu0
        %v522 = vadd.f32 %v270, %v521
        %v523 = vpop.f32.mrf.mxu0
        %v524 = vadd.f32 %v270, %v523
        %525 = vdwg.mxu0
        %v526 = vmax.f32 %v447, 0.0
        %v527 = vmax.f32 %v449, 0.0
        %v528 = vmax.f32 %v452, 0.0
        %v529 = vmax.f32 %v454, 0.0
        %v530 = vmax.f32 %v457, 0.0
        %v531 = vmax.f32 %v459, 0.0
        %v532 = vmax.f32 %v462, 0.0
        %v533 = vmax.f32 %v464, 0.0
        %v534 = vmax.f32 %v467, 0.0
        %v535 = vmax.f32 %v469, 0.0
        %v536 = vmax.f32 %v472, 0.0
        %v537 = vmax.f32 %v474, 0.0
        %v538 = vmax.f32 %v477, 0.0
        %v539 = vmax.f32 %v479, 0.0
        %v540 = vmax.f32 %v482, 0.0
        %v541 = vmax.f32 %v484, 0.0
        %v542 = vmax.f32 %v487, 0.0
        %v543 = vmax.f32 %v489, 0.0
        %v544 = vmax.f32 %v492, 0.0
        %v545 = vmax.f32 %v494, 0.0
        %v546 = vmax.f32 %v497, 0.0
        %v547 = vmax.f32 %v499, 0.0
        %v548 = vmax.f32 %v502, 0.0
        %v549 = vmax.f32 %v504, 0.0
        %v550 = vmax.f32 %v507, 0.0
        %v551 = vmax.f32 %v509, 0.0
        %v552 = vmax.f32 %v512, 0.0
        %v553 = vmax.f32 %v514, 0.0
        %v554 = vmax.f32 %v517, 0.0
        %v555 = vmax.f32 %v519, 0.0
        %v556 = vmax.f32 %v522, 0.0
        %v557 = vmax.f32 %v524, 0.0
        %vm590 = vcmask 1040384
        %v591 = vrot.slane %v526, 7
        %v592 = vrot.slane %v527, 7
        %v593 = vsel %vm590, %v591, %v592
        %v594 = vrot.slane %v528, 7
        %v595 = vsel %vm590, %v592, %v594
        %v596 = vrot.slane %v529, 7
        %v597 = vsel %vm590, %v594, %v596
        %v598 = vrot.slane %v530, 7
        %v599 = vsel %vm590, %v596, %v598
        %v600 = vrot.slane %v531, 7
        %v601 = vsel %vm590, %v598, %v600
        %v602 = vrot.slane %v532, 7
        %v603 = vsel %vm590, %v600, %v602
        %v604 = vrot.slane %v533, 7
        %v605 = vsel %vm590, %v602, %v604
        %v606 = vrot.slane %v534, 7
        %v607 = vsel %vm590, %v604, %v606
        %v608 = vrot.slane %v535, 7
        %v609 = vsel %vm590, %v606, %v608
        %v610 = vrot.slane %v536, 7
        %v611 = vsel %vm590, %v608, %v610
        %v612 = vrot.slane %v537, 7
        %v613 = vsel %vm590, %v610, %v612
        %v614 = vrot.slane %v538, 7
        %v615 = vsel %vm590, %v612, %v614
        %v616 = vrot.slane %v539, 7
        %v617 = vsel %vm590, %v614, %v616
        %v618 = vrot.slane %v540, 7
        %v619 = vsel %vm590, %v616, %v618
        %v620 = vrot.slane %v541, 7
        %v621 = vsel %vm590, %v618, %v620
        %v622 = vrot.slane %v542, 7
        %v623 = vsel %vm590, %v620, %v622
        %v624 = vrot.slane %v543, 7
        %v625 = vsel %vm590, %v622, %v624
        %v626 = vrot.slane %v544, 7
        %v627 = vsel %vm590, %v624, %v626
        %v628 = vrot.slane %v545, 7
        %v629 = vsel %vm590, %v626, %v628
        %v630 = vrot.slane %v546, 7
        %v631 = vsel %vm590, %v628, %v630
        %v632 = vrot.slane %v547, 7
        %v633 = vsel %vm590, %v630, %v632
        %v634 = vrot.slane %v548, 7
        %v635 = vsel %vm590, %v632, %v634
        %v636 = vrot.slane %v549, 7
        %v637 = vsel %vm590, %v634, %v636
        %v638 = vrot.slane %v550, 7
        %v639 = vsel %vm590, %v636, %v638
        %v640 = vrot.slane %v551, 7
        %v641 = vsel %vm590, %v638, %v640
        %v642 = vrot.slane %v552, 7
        %v643 = vsel %vm590, %v640, %v642
        %v644 = vrot.slane %v553, 7
        %v645 = vsel %vm590, %v642, %v644
        %v646 = vrot.slane %v554, 7
        %v647 = vsel %vm590, %v644, %v646
        %v648 = vrot.slane %v555, 7
        %v649 = vsel %vm590, %v646, %v648
        %v650 = vrot.slane %v556, 7
        %v651 = vsel %vm590, %v648, %v650
        %v652 = vrot.slane %v557, 7
        %v653 = vsel %vm590, %v650, %v652
        %v687 = vsel %vm590, 0.0, %v591
        %v688 = vsel %vm590, %v652, 0.0
        %v689 = vlaneseq
        %v690 = vshrl.u32 %v689, 7
        %v691 = vadd.s32 %v690, 8
        %v692 = vadd.s32 %v690, 16
        %v693 = vadd.s32 %v690, 24
        %v694 = vadd.s32 %v690, 32
        %v695 = vadd.s32 %v690, 40
        %v696 = vadd.s32 %v690, 48
        %v697 = vadd.s32 %v690, 56
        %v698 = vadd.s32 %v690, 64
        %v699 = vadd.s32 %v690, 72
        %v700 = vadd.s32 %v690, 80
        %v701 = vadd.s32 %v690, 88
        %v702 = vadd.s32 %v690, 96
        %v703 = vadd.s32 %v690, 104
        %v704 = vadd.s32 %v690, 112
        %v705 = vadd.s32 %v690, 120
        %v706 = vadd.s32 %v690, 128
        %v707 = vadd.s32 %v690, 136
        %v708 = vadd.s32 %v690, 144
        %v709 = vadd.s32 %v690, 152
        %v710 = vadd.s32 %v690, 160
        %v711 = vadd.s32 %v690, 168
        %v712 = vadd.s32 %v690, 176
        %v713 = vadd.s32 %v690, 184
        %v714 = vadd.s32 %v690, 192
        %v715 = vadd.s32 %v690, 200
        %v716 = vadd.s32 %v690, 208
        %v717 = vadd.s32 %v690, 216
        %v718 = vadd.s32 %v690, 224
        %v719 = vadd.s32 %v690, 232
        %v720 = vadd.s32 %v690, 240
        %v721 = vadd.s32 %v690, 248
        %vm722 = vcmp.lt.s32.totalorder %v690, 0
        %v723 = vsub.s32 0, %v690
        %v724 = vsel %vm722, %v723, %v690
        %v725 = vshrl.u32 %v724, 4
        %v726 = vand.u32 %v724, 15
        %v727 = vsub.s32 0, %v726
        %v728 = vsel %vm722, %v727, %v726
        %vm729 = vcmp.lt.s32.totalorder %v691, 0
        %v730 = vsub.s32 0, %v691
        %v731 = vsel %vm729, %v730, %v691
        %v732 = vshrl.u32 %v731, 4
        %v733 = vand.u32 %v731, 15
        %v734 = vsub.s32 0, %v733
        %v735 = vsel %vm729, %v734, %v733
        %vm736 = vcmp.lt.s32.totalorder %v692, 0
        %v737 = vsub.s32 0, %v692
        %v738 = vsel %vm736, %v737, %v692
        %v739 = vshrl.u32 %v738, 4
        %v740 = vand.u32 %v738, 15
        %v741 = vsub.s32 0, %v740
        %v742 = vsel %vm736, %v741, %v740
        %vm743 = vcmp.lt.s32.totalorder %v693, 0
        %v744 = vsub.s32 0, %v693
        %v745 = vsel %vm743, %v744, %v693
        %v746 = vshrl.u32 %v745, 4
        %v747 = vand.u32 %v745, 15
        %v748 = vsub.s32 0, %v747
        %v749 = vsel %vm743, %v748, %v747
        %vm750 = vcmp.lt.s32.totalorder %v694, 0
        %v751 = vsub.s32 0, %v694
        %v752 = vsel %vm750, %v751, %v694
        %v753 = vshrl.u32 %v752, 4
        %v754 = vand.u32 %v752, 15
        %v755 = vsub.s32 0, %v754
        %v756 = vsel %vm750, %v755, %v754
        %vm757 = vcmp.lt.s32.totalorder %v695, 0
        %v758 = vsub.s32 0, %v695
        %v759 = vsel %vm757, %v758, %v695
        %v760 = vshrl.u32 %v759, 4
        %v761 = vand.u32 %v759, 15
        %v762 = vsub.s32 0, %v761
        %v763 = vsel %vm757, %v762, %v761
        %vm764 = vcmp.lt.s32.totalorder %v696, 0
        %v765 = vsub.s32 0, %v696
        %v766 = vsel %vm764, %v765, %v696
        %v767 = vshrl.u32 %v766, 4
        %v768 = vand.u32 %v766, 15
        %v769 = vsub.s32 0, %v768
        %v770 = vsel %vm764, %v769, %v768
        %vm771 = vcmp.lt.s32.totalorder %v697, 0
        %v772 = vsub.s32 0, %v697
        %v773 = vsel %vm771, %v772, %v697
        %v774 = vshrl.u32 %v773, 4
        %v775 = vand.u32 %v773, 15
        %v776 = vsub.s32 0, %v775
        %v777 = vsel %vm771, %v776, %v775
        %vm778 = vcmp.lt.s32.totalorder %v698, 0
        %v779 = vsub.s32 0, %v698
        %v780 = vsel %vm778, %v779, %v698
        %v781 = vshrl.u32 %v780, 4
        %v782 = vand.u32 %v780, 15
        %v783 = vsub.s32 0, %v782
        %v784 = vsel %vm778, %v783, %v782
        %vm785 = vcmp.lt.s32.totalorder %v699, 0
        %v786 = vsub.s32 0, %v699
        %v787 = vsel %vm785, %v786, %v699
        %v788 = vshrl.u32 %v787, 4
        %v789 = vand.u32 %v787, 15
        %v790 = vsub.s32 0, %v789
        %v791 = vsel %vm785, %v790, %v789
        %vm792 = vcmp.lt.s32.totalorder %v700, 0
        %v793 = vsub.s32 0, %v700
        %v794 = vsel %vm792, %v793, %v700
        %v795 = vshrl.u32 %v794, 4
        %v796 = vand.u32 %v794, 15
        %v797 = vsub.s32 0, %v796
        %v798 = vsel %vm792, %v797, %v796
        %vm799 = vcmp.lt.s32.totalorder %v701, 0
        %v800 = vsub.s32 0, %v701
        %v801 = vsel %vm799, %v800, %v701
        %v802 = vshrl.u32 %v801, 4
        %v803 = vand.u32 %v801, 15
        %v804 = vsub.s32 0, %v803
        %v805 = vsel %vm799, %v804, %v803
        %vm806 = vcmp.lt.s32.totalorder %v702, 0
        %v807 = vsub.s32 0, %v702
        %v808 = vsel %vm806, %v807, %v702
        %v809 = vshrl.u32 %v808, 4
        %v810 = vand.u32 %v808, 15
        %v811 = vsub.s32 0, %v810
        %v812 = vsel %vm806, %v811, %v810
        %vm813 = vcmp.lt.s32.totalorder %v703, 0
        %v814 = vsub.s32 0, %v703
        %v815 = vsel %vm813, %v814, %v703
        %v816 = vshrl.u32 %v815, 4
        %v817 = vand.u32 %v815, 15
        %v818 = vsub.s32 0, %v817
        %v819 = vsel %vm813, %v818, %v817
        %vm820 = vcmp.lt.s32.totalorder %v704, 0
        %v821 = vsub.s32 0, %v704
        %v822 = vsel %vm820, %v821, %v704
        %v823 = vshrl.u32 %v822, 4
        %v824 = vand.u32 %v822, 15
        %v825 = vsub.s32 0, %v824
        %v826 = vsel %vm820, %v825, %v824
        %vm827 = vcmp.lt.s32.totalorder %v705, 0
        %v828 = vsub.s32 0, %v705
        %v829 = vsel %vm827, %v828, %v705
        %v830 = vshrl.u32 %v829, 4
        %v831 = vand.u32 %v829, 15
        %v832 = vsub.s32 0, %v831
        %v833 = vsel %vm827, %v832, %v831
        %vm834 = vcmp.lt.s32.totalorder %v706, 0
        %v835 = vsub.s32 0, %v706
        %v836 = vsel %vm834, %v835, %v706
        %v837 = vshrl.u32 %v836, 4
        %v838 = vand.u32 %v836, 15
        %v839 = vsub.s32 0, %v838
        %v840 = vsel %vm834, %v839, %v838
        %vm841 = vcmp.lt.s32.totalorder %v707, 0
        %v842 = vsub.s32 0, %v707
        %v843 = vsel %vm841, %v842, %v707
        %v844 = vshrl.u32 %v843, 4
        %v845 = vand.u32 %v843, 15
        %v846 = vsub.s32 0, %v845
        %v847 = vsel %vm841, %v846, %v845
        %vm848 = vcmp.lt.s32.totalorder %v708, 0
        %v849 = vsub.s32 0, %v708
        %v850 = vsel %vm848, %v849, %v708
        %v851 = vshrl.u32 %v850, 4
        %v852 = vand.u32 %v850, 15
        %v853 = vsub.s32 0, %v852
        %v854 = vsel %vm848, %v853, %v852
        %vm855 = vcmp.lt.s32.totalorder %v709, 0
        %v856 = vsub.s32 0, %v709
        %v857 = vsel %vm855, %v856, %v709
        %v858 = vshrl.u32 %v857, 4
        %v859 = vand.u32 %v857, 15
        %v860 = vsub.s32 0, %v859
        %v861 = vsel %vm855, %v860, %v859
        %vm862 = vcmp.lt.s32.totalorder %v710, 0
        %v863 = vsub.s32 0, %v710
        %v864 = vsel %vm862, %v863, %v710
        %v865 = vshrl.u32 %v864, 4
        %v866 = vand.u32 %v864, 15
        %v867 = vsub.s32 0, %v866
        %v868 = vsel %vm862, %v867, %v866
        %vm869 = vcmp.lt.s32.totalorder %v711, 0
        %v870 = vsub.s32 0, %v711
        %v871 = vsel %vm869, %v870, %v711
        %v872 = vshrl.u32 %v871, 4
        %v873 = vand.u32 %v871, 15
        %v874 = vsub.s32 0, %v873
        %v875 = vsel %vm869, %v874, %v873
        %vm876 = vcmp.lt.s32.totalorder %v712, 0
        %v877 = vsub.s32 0, %v712
        %v878 = vsel %vm876, %v877, %v712
        %v879 = vshrl.u32 %v878, 4
        %v880 = vand.u32 %v878, 15
        %v881 = vsub.s32 0, %v880
        %v882 = vsel %vm876, %v881, %v880
        %vm883 = vcmp.lt.s32.totalorder %v713, 0
        %v884 = vsub.s32 0, %v713
        %v885 = vsel %vm883, %v884, %v713
        %v886 = vshrl.u32 %v885, 4
        %v887 = vand.u32 %v885, 15
        %v888 = vsub.s32 0, %v887
        %v889 = vsel %vm883, %v888, %v887
        %vm890 = vcmp.lt.s32.totalorder %v714, 0
        %v891 = vsub.s32 0, %v714
        %v892 = vsel %vm890, %v891, %v714
        %v893 = vshrl.u32 %v892, 4
        %v894 = vand.u32 %v892, 15
        %v895 = vsub.s32 0, %v894
        %v896 = vsel %vm890, %v895, %v894
        %vm897 = vcmp.lt.s32.totalorder %v715, 0
        %v898 = vsub.s32 0, %v715
        %v899 = vsel %vm897, %v898, %v715
        %v900 = vshrl.u32 %v899, 4
        %v901 = vand.u32 %v899, 15
        %v902 = vsub.s32 0, %v901
        %v903 = vsel %vm897, %v902, %v901
        %vm904 = vcmp.lt.s32.totalorder %v716, 0
        %v905 = vsub.s32 0, %v716
        %v906 = vsel %vm904, %v905, %v716
        %v907 = vshrl.u32 %v906, 4
        %v908 = vand.u32 %v906, 15
        %v909 = vsub.s32 0, %v908
        %v910 = vsel %vm904, %v909, %v908
        %vm911 = vcmp.lt.s32.totalorder %v717, 0
        %v912 = vsub.s32 0, %v717
        %v913 = vsel %vm911, %v912, %v717
        %v914 = vshrl.u32 %v913, 4
        %v915 = vand.u32 %v913, 15
        %v916 = vsub.s32 0, %v915
        %v917 = vsel %vm911, %v916, %v915
        %vm918 = vcmp.lt.s32.totalorder %v718, 0
        %v919 = vsub.s32 0, %v718
        %v920 = vsel %vm918, %v919, %v718
        %v921 = vshrl.u32 %v920, 4
        %v922 = vand.u32 %v920, 15
        %v923 = vsub.s32 0, %v922
        %v924 = vsel %vm918, %v923, %v922
        %vm925 = vcmp.lt.s32.totalorder %v719, 0
        %v926 = vsub.s32 0, %v719
        %v927 = vsel %vm925, %v926, %v719
        %v928 = vshrl.u32 %v927, 4
        %v929 = vand.u32 %v927, 15
        %v930 = vsub.s32 0, %v929
        %v931 = vsel %vm925, %v930, %v929
        %vm932 = vcmp.lt.s32.totalorder %v720, 0
        %v933 = vsub.s32 0, %v720
        %v934 = vsel %vm932, %v933, %v720
        %v935 = vshrl.u32 %v934, 4
        %v936 = vand.u32 %v934, 15
        %v937 = vsub.s32 0, %v936
        %v938 = vsel %vm932, %v937, %v936
        %vm939 = vcmp.lt.s32.totalorder %v721, 0
        %v940 = vsub.s32 0, %v721
        %v941 = vsel %vm939, %v940, %v721
        %v942 = vshrl.u32 %v941, 4
        %v943 = vand.u32 %v941, 15
        %v944 = vsub.s32 0, %v943
        %v945 = vsel %vm939, %v944, %v943
        %vm946 = vcmp.ne.s32.totalorder %v728, 0
        %vm947 = vcmp.ne.s32.totalorder %v735, 0
        %vm948 = vcmp.ne.s32.totalorder %v742, 0
        %vm949 = vcmp.ne.s32.totalorder %v749, 0
        %vm950 = vcmp.ne.s32.totalorder %v756, 0
        %vm951 = vcmp.ne.s32.totalorder %v763, 0
        %vm952 = vcmp.ne.s32.totalorder %v770, 0
        %vm953 = vcmp.ne.s32.totalorder %v777, 0
        %vm954 = vcmp.ne.s32.totalorder %v784, 0
        %vm955 = vcmp.ne.s32.totalorder %v791, 0
        %vm956 = vcmp.ne.s32.totalorder %v798, 0
        %vm957 = vcmp.ne.s32.totalorder %v805, 0
        %vm958 = vcmp.ne.s32.totalorder %v812, 0
        %vm959 = vcmp.ne.s32.totalorder %v819, 0
        %vm960 = vcmp.ne.s32.totalorder %v826, 0
        %vm961 = vcmp.ne.s32.totalorder %v833, 0
        %vm962 = vcmp.ne.s32.totalorder %v840, 0
        %vm963 = vcmp.ne.s32.totalorder %v847, 0
        %vm964 = vcmp.ne.s32.totalorder %v854, 0
        %vm965 = vcmp.ne.s32.totalorder %v861, 0
        %vm966 = vcmp.ne.s32.totalorder %v868, 0
        %vm967 = vcmp.ne.s32.totalorder %v875, 0
        %vm968 = vcmp.ne.s32.totalorder %v882, 0
        %vm969 = vcmp.ne.s32.totalorder %v889, 0
        %vm970 = vcmp.ne.s32.totalorder %v896, 0
        %vm971 = vcmp.ne.s32.totalorder %v903, 0
        %vm972 = vcmp.ne.s32.totalorder %v910, 0
        %vm973 = vcmp.ne.s32.totalorder %v917, 0
        %vm974 = vcmp.ne.s32.totalorder %v924, 0
        %vm975 = vcmp.ne.s32.totalorder %v931, 0
        %vm976 = vcmp.ne.s32.totalorder %v938, 0
        %vm977 = vcmp.ne.s32.totalorder %v945, 0
        %vm978 = vcmp.lt.s32.totalorder %v728, 0
        %vm979 = vcmp.lt.s32.totalorder %v735, 0
        %vm980 = vcmp.lt.s32.totalorder %v742, 0
        %vm981 = vcmp.lt.s32.totalorder %v749, 0
        %vm982 = vcmp.lt.s32.totalorder %v756, 0
        %vm983 = vcmp.lt.s32.totalorder %v763, 0
        %vm984 = vcmp.lt.s32.totalorder %v770, 0
        %vm985 = vcmp.lt.s32.totalorder %v777, 0
        %vm986 = vcmp.lt.s32.totalorder %v784, 0
        %vm987 = vcmp.lt.s32.totalorder %v791, 0
        %vm988 = vcmp.lt.s32.totalorder %v798, 0
        %vm989 = vcmp.lt.s32.totalorder %v805, 0
        %vm990 = vcmp.lt.s32.totalorder %v812, 0
        %vm991 = vcmp.lt.s32.totalorder %v819, 0
        %vm992 = vcmp.lt.s32.totalorder %v826, 0
        %vm993 = vcmp.lt.s32.totalorder %v833, 0
        %vm994 = vcmp.lt.s32.totalorder %v840, 0
        %vm995 = vcmp.lt.s32.totalorder %v847, 0
        %vm996 = vcmp.lt.s32.totalorder %v854, 0
        %vm997 = vcmp.lt.s32.totalorder %v861, 0
        %vm998 = vcmp.lt.s32.totalorder %v868, 0
        %vm999 = vcmp.lt.s32.totalorder %v875, 0
        %vm1000 = vcmp.lt.s32.totalorder %v882, 0
        %vm1001 = vcmp.lt.s32.totalorder %v889, 0
        %vm1002 = vcmp.lt.s32.totalorder %v896, 0
        %vm1003 = vcmp.lt.s32.totalorder %v903, 0
        %vm1004 = vcmp.lt.s32.totalorder %v910, 0
        %vm1005 = vcmp.lt.s32.totalorder %v917, 0
        %vm1006 = vcmp.lt.s32.totalorder %v924, 0
        %vm1007 = vcmp.lt.s32.totalorder %v931, 0
        %vm1008 = vcmp.lt.s32.totalorder %v938, 0
        %vm1009 = vcmp.lt.s32.totalorder %v945, 0
        %vm1010 = vmand %vm978, %vm946
        %vm1011 = vmand %vm979, %vm947
        %vm1012 = vmand %vm980, %vm948
        %vm1013 = vmand %vm981, %vm949
        %vm1014 = vmand %vm982, %vm950
        %vm1015 = vmand %vm983, %vm951
        %vm1016 = vmand %vm984, %vm952
        %vm1017 = vmand %vm985, %vm953
        %vm1018 = vmand %vm986, %vm954
        %vm1019 = vmand %vm987, %vm955
        %vm1020 = vmand %vm988, %vm956
        %vm1021 = vmand %vm989, %vm957
        %vm1022 = vmand %vm990, %vm958
        %vm1023 = vmand %vm991, %vm959
        %vm1024 = vmand %vm992, %vm960
        %vm1025 = vmand %vm993, %vm961
        %vm1026 = vmand %vm994, %vm962
        %vm1027 = vmand %vm995, %vm963
        %vm1028 = vmand %vm996, %vm964
        %vm1029 = vmand %vm997, %vm965
        %vm1030 = vmand %vm998, %vm966
        %vm1031 = vmand %vm999, %vm967
        %vm1032 = vmand %vm1000, %vm968
        %vm1033 = vmand %vm1001, %vm969
        %vm1034 = vmand %vm1002, %vm970
        %vm1035 = vmand %vm1003, %vm971
        %vm1036 = vmand %vm1004, %vm972
        %vm1037 = vmand %vm1005, %vm973
        %vm1038 = vmand %vm1006, %vm974
        %vm1039 = vmand %vm1007, %vm975
        %vm1040 = vmand %vm1008, %vm976
        %vm1041 = vmand %vm1009, %vm977
        %v1042 = vadd.s32 %v728, 16
        %v1043 = vadd.s32 %v735, 16
        %v1044 = vadd.s32 %v742, 16
        %v1045 = vadd.s32 %v749, 16
        %v1046 = vadd.s32 %v756, 16
        %v1047 = vadd.s32 %v763, 16
        %v1048 = vadd.s32 %v770, 16
        %v1049 = vadd.s32 %v777, 16
        %v1050 = vadd.s32 %v784, 16
        %v1051 = vadd.s32 %v791, 16
        %v1052 = vadd.s32 %v798, 16
        %v1053 = vadd.s32 %v805, 16
        %v1054 = vadd.s32 %v812, 16
        %v1055 = vadd.s32 %v819, 16
        %v1056 = vadd.s32 %v826, 16
        %v1057 = vadd.s32 %v833, 16
        %v1058 = vadd.s32 %v840, 16
        %v1059 = vadd.s32 %v847, 16
        %v1060 = vadd.s32 %v854, 16
        %v1061 = vadd.s32 %v861, 16
        %v1062 = vadd.s32 %v868, 16
        %v1063 = vadd.s32 %v875, 16
        %v1064 = vadd.s32 %v882, 16
        %v1065 = vadd.s32 %v889, 16
        %v1066 = vadd.s32 %v896, 16
        %v1067 = vadd.s32 %v903, 16
        %v1068 = vadd.s32 %v910, 16
        %v1069 = vadd.s32 %v917, 16
        %v1070 = vadd.s32 %v924, 16
        %v1071 = vadd.s32 %v931, 16
        %v1072 = vadd.s32 %v938, 16
        %v1073 = vadd.s32 %v945, 16
        %v1074 = vsel %vm1010, %v1042, %v728
        %v1075 = vsel %vm1011, %v1043, %v735
        %v1076 = vsel %vm1012, %v1044, %v742
        %v1077 = vsel %vm1013, %v1045, %v749
        %v1078 = vsel %vm1014, %v1046, %v756
        %v1079 = vsel %vm1015, %v1047, %v763
        %v1080 = vsel %vm1016, %v1048, %v770
        %v1081 = vsel %vm1017, %v1049, %v777
        %v1082 = vsel %vm1018, %v1050, %v784
        %v1083 = vsel %vm1019, %v1051, %v791
        %v1084 = vsel %vm1020, %v1052, %v798
        %v1085 = vsel %vm1021, %v1053, %v805
        %v1086 = vsel %vm1022, %v1054, %v812
        %v1087 = vsel %vm1023, %v1055, %v819
        %v1088 = vsel %vm1024, %v1056, %v826
        %v1089 = vsel %vm1025, %v1057, %v833
        %v1090 = vsel %vm1026, %v1058, %v840
        %v1091 = vsel %vm1027, %v1059, %v847
        %v1092 = vsel %vm1028, %v1060, %v854
        %v1093 = vsel %vm1029, %v1061, %v861
        %v1094 = vsel %vm1030, %v1062, %v868
        %v1095 = vsel %vm1031, %v1063, %v875
        %v1096 = vsel %vm1032, %v1064, %v882
        %v1097 = vsel %vm1033, %v1065, %v889
        %v1098 = vsel %vm1034, %v1066, %v896
        %v1099 = vsel %vm1035, %v1067, %v903
        %v1100 = vsel %vm1036, %v1068, %v910
        %v1101 = vsel %vm1037, %v1069, %v917
        %v1102 = vsel %vm1038, %v1070, %v924
        %v1103 = vsel %vm1039, %v1071, %v931
        %v1104 = vsel %vm1040, %v1072, %v938
        %v1105 = vsel %vm1041, %v1073, %v945
        %vm1106 = vcmp.gt.s32.totalorder %v1074, 0
        %vm1107 = vcmp.gt.s32.totalorder %v1075, 0
        %vm1108 = vcmp.gt.s32.totalorder %v1076, 0
        %vm1109 = vcmp.gt.s32.totalorder %v1077, 0
        %vm1110 = vcmp.gt.s32.totalorder %v1078, 0
        %vm1111 = vcmp.gt.s32.totalorder %v1079, 0
        %vm1112 = vcmp.gt.s32.totalorder %v1080, 0
        %vm1113 = vcmp.gt.s32.totalorder %v1081, 0
        %vm1114 = vcmp.gt.s32.totalorder %v1082, 0
        %vm1115 = vcmp.gt.s32.totalorder %v1083, 0
        %vm1116 = vcmp.gt.s32.totalorder %v1084, 0
        %vm1117 = vcmp.gt.s32.totalorder %v1085, 0
        %vm1118 = vcmp.gt.s32.totalorder %v1086, 0
        %vm1119 = vcmp.gt.s32.totalorder %v1087, 0
        %vm1120 = vcmp.gt.s32.totalorder %v1088, 0
        %vm1121 = vcmp.gt.s32.totalorder %v1089, 0
        %vm1122 = vcmp.gt.s32.totalorder %v1090, 0
        %vm1123 = vcmp.gt.s32.totalorder %v1091, 0
        %vm1124 = vcmp.gt.s32.totalorder %v1092, 0
        %vm1125 = vcmp.gt.s32.totalorder %v1093, 0
        %vm1126 = vcmp.gt.s32.totalorder %v1094, 0
        %vm1127 = vcmp.gt.s32.totalorder %v1095, 0
        %vm1128 = vcmp.gt.s32.totalorder %v1096, 0
        %vm1129 = vcmp.gt.s32.totalorder %v1097, 0
        %vm1130 = vcmp.gt.s32.totalorder %v1098, 0
        %vm1131 = vcmp.gt.s32.totalorder %v1099, 0
        %vm1132 = vcmp.gt.s32.totalorder %v1100, 0
        %vm1133 = vcmp.gt.s32.totalorder %v1101, 0
        %vm1134 = vcmp.gt.s32.totalorder %v1102, 0
        %vm1135 = vcmp.gt.s32.totalorder %v1103, 0
        %vm1136 = vcmp.gt.s32.totalorder %v1104, 0
        %vm1137 = vcmp.gt.s32.totalorder %v1105, 0
        %vm1138 = vcmp.lt.s32.totalorder %v1074, 15
        %vm1139 = vcmp.lt.s32.totalorder %v1075, 15
        %vm1140 = vcmp.lt.s32.totalorder %v1076, 15
        %vm1141 = vcmp.lt.s32.totalorder %v1077, 15
        %vm1142 = vcmp.lt.s32.totalorder %v1078, 15
        %vm1143 = vcmp.lt.s32.totalorder %v1079, 15
        %vm1144 = vcmp.lt.s32.totalorder %v1080, 15
        %vm1145 = vcmp.lt.s32.totalorder %v1081, 15
        %vm1146 = vcmp.lt.s32.totalorder %v1082, 15
        %vm1147 = vcmp.lt.s32.totalorder %v1083, 15
        %vm1148 = vcmp.lt.s32.totalorder %v1084, 15
        %vm1149 = vcmp.lt.s32.totalorder %v1085, 15
        %vm1150 = vcmp.lt.s32.totalorder %v1086, 15
        %vm1151 = vcmp.lt.s32.totalorder %v1087, 15
        %vm1152 = vcmp.lt.s32.totalorder %v1088, 15
        %vm1153 = vcmp.lt.s32.totalorder %v1089, 15
        %vm1154 = vcmp.lt.s32.totalorder %v1090, 15
        %vm1155 = vcmp.lt.s32.totalorder %v1091, 15
        %vm1156 = vcmp.lt.s32.totalorder %v1092, 15
        %vm1157 = vcmp.lt.s32.totalorder %v1093, 15
        %vm1158 = vcmp.lt.s32.totalorder %v1094, 15
        %vm1159 = vcmp.lt.s32.totalorder %v1095, 15
        %vm1160 = vcmp.lt.s32.totalorder %v1096, 15
        %vm1161 = vcmp.lt.s32.totalorder %v1097, 15
        %vm1162 = vcmp.lt.s32.totalorder %v1098, 15
        %vm1163 = vcmp.lt.s32.totalorder %v1099, 15
        %vm1164 = vcmp.lt.s32.totalorder %v1100, 15
        %vm1165 = vcmp.lt.s32.totalorder %v1101, 15
        %vm1166 = vcmp.lt.s32.totalorder %v1102, 15
        %vm1167 = vcmp.lt.s32.totalorder %v1103, 15
        %vm1168 = vcmp.lt.s32.totalorder %v1104, 15
        %vm1169 = vcmp.lt.s32.totalorder %v1105, 15
        %v1170 = vsel %vm1108, %v687, 0.0
        %v1171 = vsel %vm1109, %v593, 0.0
        %v1172 = vsel %vm1110, %v595, 0.0
        %v1173 = vsel %vm1111, %v597, 0.0
        %v1174 = vsel %vm1112, %v599, 0.0
        %v1175 = vsel %vm1113, %v601, 0.0
        %v1176 = vsel %vm1114, %v603, 0.0
        %v1177 = vsel %vm1115, %v605, 0.0
        %v1178 = vsel %vm1116, %v607, 0.0
        %v1179 = vsel %vm1117, %v609, 0.0
        %v1180 = vsel %vm1118, %v611, 0.0
        %v1181 = vsel %vm1119, %v613, 0.0
        %v1182 = vsel %vm1120, %v615, 0.0
        %v1183 = vsel %vm1121, %v617, 0.0
        %v1184 = vsel %vm1122, %v619, 0.0
        %v1185 = vsel %vm1123, %v621, 0.0
        %v1186 = vsel %vm1124, %v623, 0.0
        %v1187 = vsel %vm1125, %v625, 0.0
        %v1188 = vsel %vm1126, %v627, 0.0
        %v1189 = vsel %vm1127, %v629, 0.0
        %v1190 = vsel %vm1128, %v631, 0.0
        %v1191 = vsel %vm1129, %v633, 0.0
        %v1192 = vsel %vm1130, %v635, 0.0
        %v1193 = vsel %vm1131, %v637, 0.0
        %v1194 = vsel %vm1132, %v639, 0.0
        %v1195 = vsel %vm1133, %v641, 0.0
        %v1196 = vsel %vm1134, %v643, 0.0
        %v1197 = vsel %vm1135, %v645, 0.0
        %v1198 = vsel %vm1136, %v647, 0.0
        %v1199 = vsel %vm1137, %v649, 0.0
        %vm1202 = vcmask 1045504
        %v1203 = vrot.slane 0.0, 2
        %v1204 = vsel %vm1202, %v1203, %v1203
        %v1205 = vrot.slane %v687, 2
        %v1206 = vsel %vm1202, %v1203, %v1205
        %v1207 = vrot.slane %v593, 2
        %v1208 = vsel %vm1202, %v1205, %v1207
        %v1209 = vrot.slane %v595, 2
        %v1210 = vsel %vm1202, %v1207, %v1209
        %v1211 = vrot.slane %v597, 2
        %v1212 = vsel %vm1202, %v1209, %v1211
        %v1213 = vrot.slane %v599, 2
        %v1214 = vsel %vm1202, %v1211, %v1213
        %v1215 = vrot.slane %v601, 2
        %v1216 = vsel %vm1202, %v1213, %v1215
        %v1217 = vrot.slane %v603, 2
        %v1218 = vsel %vm1202, %v1215, %v1217
        %v1219 = vrot.slane %v605, 2
        %v1220 = vsel %vm1202, %v1217, %v1219
        %v1221 = vrot.slane %v607, 2
        %v1222 = vsel %vm1202, %v1219, %v1221
        %v1223 = vrot.slane %v609, 2
        %v1224 = vsel %vm1202, %v1221, %v1223
        %v1225 = vrot.slane %v611, 2
        %v1226 = vsel %vm1202, %v1223, %v1225
        %v1227 = vrot.slane %v613, 2
        %v1228 = vsel %vm1202, %v1225, %v1227
        %v1229 = vrot.slane %v615, 2
        %v1230 = vsel %vm1202, %v1227, %v1229
        %v1231 = vrot.slane %v617, 2
        %v1232 = vsel %vm1202, %v1229, %v1231
        %v1233 = vrot.slane %v619, 2
        %v1234 = vsel %vm1202, %v1231, %v1233
        %v1235 = vrot.slane %v621, 2
        %v1236 = vsel %vm1202, %v1233, %v1235
        %v1237 = vrot.slane %v623, 2
        %v1238 = vsel %vm1202, %v1235, %v1237
        %v1239 = vrot.slane %v625, 2
        %v1240 = vsel %vm1202, %v1237, %v1239
        %v1241 = vrot.slane %v627, 2
        %v1242 = vsel %vm1202, %v1239, %v1241
        %v1243 = vrot.slane %v629, 2
        %v1244 = vsel %vm1202, %v1241, %v1243
        %v1245 = vrot.slane %v631, 2
        %v1246 = vsel %vm1202, %v1243, %v1245
        %v1247 = vrot.slane %v633, 2
        %v1248 = vsel %vm1202, %v1245, %v1247
        %v1249 = vrot.slane %v635, 2
        %v1250 = vsel %vm1202, %v1247, %v1249
        %v1251 = vrot.slane %v637, 2
        %v1252 = vsel %vm1202, %v1249, %v1251
        %v1253 = vrot.slane %v639, 2
        %v1254 = vsel %vm1202, %v1251, %v1253
        %v1255 = vrot.slane %v641, 2
        %v1256 = vsel %vm1202, %v1253, %v1255
        %v1257 = vrot.slane %v643, 2
        %v1258 = vsel %vm1202, %v1255, %v1257
        %v1259 = vrot.slane %v645, 2
        %v1260 = vsel %vm1202, %v1257, %v1259
        %v1261 = vrot.slane %v647, 2
        %v1262 = vsel %vm1202, %v1259, %v1261
        %v1263 = vrot.slane %v649, 2
        %v1264 = vsel %vm1202, %v1261, %v1263
        %v1265 = vrot.slane %v651, 2
        %v1266 = vsel %vm1202, %v1263, %v1265
        %v1299 = vsel %vm1138, %v1204, 0.0
        %v1300 = vsel %vm1139, %v1206, 0.0
        %v1301 = vsel %vm1140, %v1208, 0.0
        %v1302 = vsel %vm1141, %v1210, 0.0
        %v1303 = vsel %vm1142, %v1212, 0.0
        %v1304 = vsel %vm1143, %v1214, 0.0
        %v1305 = vsel %vm1144, %v1216, 0.0
        %v1306 = vsel %vm1145, %v1218, 0.0
        %v1307 = vsel %vm1146, %v1220, 0.0
        %v1308 = vsel %vm1147, %v1222, 0.0
        %v1309 = vsel %vm1148, %v1224, 0.0
        %v1310 = vsel %vm1149, %v1226, 0.0
        %v1311 = vsel %vm1150, %v1228, 0.0
        %v1312 = vsel %vm1151, %v1230, 0.0
        %v1313 = vsel %vm1152, %v1232, 0.0
        %v1314 = vsel %vm1153, %v1234, 0.0
        %v1315 = vsel %vm1154, %v1236, 0.0
        %v1316 = vsel %vm1155, %v1238, 0.0
        %v1317 = vsel %vm1156, %v1240, 0.0
        %v1318 = vsel %vm1157, %v1242, 0.0
        %v1319 = vsel %vm1158, %v1244, 0.0
        %v1320 = vsel %vm1159, %v1246, 0.0
        %v1321 = vsel %vm1160, %v1248, 0.0
        %v1322 = vsel %vm1161, %v1250, 0.0
        %v1323 = vsel %vm1162, %v1252, 0.0
        %v1324 = vsel %vm1163, %v1254, 0.0
        %v1325 = vsel %vm1164, %v1256, 0.0
        %v1326 = vsel %vm1165, %v1258, 0.0
        %v1327 = vsel %vm1166, %v1260, 0.0
        %v1328 = vsel %vm1167, %v1262, 0.0
        %v1329 = vsel %vm1168, %v1264, 0.0
        %v1330 = vsel %vm1169, %v1266, 0.0
        %v1331 = vsel %vm1106, %v687, 0.0
        %v1332 = vsel %vm1107, %v593, 0.0
        %v1333 = vsel %vm1108, %v595, 0.0
        %v1334 = vsel %vm1109, %v597, 0.0
        %v1335 = vsel %vm1110, %v599, 0.0
        %v1336 = vsel %vm1111, %v601, 0.0
        %v1337 = vsel %vm1112, %v603, 0.0
        %v1338 = vsel %vm1113, %v605, 0.0
        %v1339 = vsel %vm1114, %v607, 0.0
        %v1340 = vsel %vm1115, %v609, 0.0
        %v1341 = vsel %vm1116, %v611, 0.0
        %v1342 = vsel %vm1117, %v613, 0.0
        %v1343 = vsel %vm1118, %v615, 0.0
        %v1344 = vsel %vm1119, %v617, 0.0
        %v1345 = vsel %vm1120, %v619, 0.0
        %v1346 = vsel %vm1121, %v621, 0.0
        %v1347 = vsel %vm1122, %v623, 0.0
        %v1348 = vsel %vm1123, %v625, 0.0
        %v1349 = vsel %vm1124, %v627, 0.0
        %v1350 = vsel %vm1125, %v629, 0.0
        %v1351 = vsel %vm1126, %v631, 0.0
        %v1352 = vsel %vm1127, %v633, 0.0
        %v1353 = vsel %vm1128, %v635, 0.0
        %v1354 = vsel %vm1129, %v637, 0.0
        %v1355 = vsel %vm1130, %v639, 0.0
        %v1356 = vsel %vm1131, %v641, 0.0
        %v1357 = vsel %vm1132, %v643, 0.0
        %v1358 = vsel %vm1133, %v645, 0.0
        %v1359 = vsel %vm1134, %v647, 0.0
        %v1360 = vsel %vm1135, %v649, 0.0
        %v1361 = vsel %vm1136, %v651, 0.0
        %v1362 = vsel %vm1137, %v653, 0.0
        %v1364 = vrot.slane %v653, 2
        %v1365 = vsel %vm1202, %v1265, %v1364
        %v1366 = vrot.slane %v688, 2
        %v1367 = vsel %vm1202, %v1364, %v1366
        %v1370 = vsel %vm1138, %v1208, 0.0
        %v1371 = vsel %vm1139, %v1210, 0.0
        %v1372 = vsel %vm1140, %v1212, 0.0
        %v1373 = vsel %vm1141, %v1214, 0.0
        %v1374 = vsel %vm1142, %v1216, 0.0
        %v1375 = vsel %vm1143, %v1218, 0.0
        %v1376 = vsel %vm1144, %v1220, 0.0
        %v1377 = vsel %vm1145, %v1222, 0.0
        %v1378 = vsel %vm1146, %v1224, 0.0
        %v1379 = vsel %vm1147, %v1226, 0.0
        %v1380 = vsel %vm1148, %v1228, 0.0
        %v1381 = vsel %vm1149, %v1230, 0.0
        %v1382 = vsel %vm1150, %v1232, 0.0
        %v1383 = vsel %vm1151, %v1234, 0.0
        %v1384 = vsel %vm1152, %v1236, 0.0
        %v1385 = vsel %vm1153, %v1238, 0.0
        %v1386 = vsel %vm1154, %v1240, 0.0
        %v1387 = vsel %vm1155, %v1242, 0.0
        %v1388 = vsel %vm1156, %v1244, 0.0
        %v1389 = vsel %vm1157, %v1246, 0.0
        %v1390 = vsel %vm1158, %v1248, 0.0
        %v1391 = vsel %vm1159, %v1250, 0.0
        %v1392 = vsel %vm1160, %v1252, 0.0
        %v1393 = vsel %vm1161, %v1254, 0.0
        %v1394 = vsel %vm1162, %v1256, 0.0
        %v1395 = vsel %vm1163, %v1258, 0.0
        %v1396 = vsel %vm1164, %v1260, 0.0
        %v1397 = vsel %vm1165, %v1262, 0.0
        %v1398 = vsel %vm1166, %v1264, 0.0
        %v1399 = vsel %vm1167, %v1266, 0.0
        %v1400 = vsel %vm1168, %v1365, 0.0
        %v1401 = vsel %vm1169, %v1367, 0.0
        %v1402 = vsel %vm1106, %v595, 0.0
        %v1403 = vsel %vm1107, %v597, 0.0
        %v1404 = vsel %vm1108, %v599, 0.0
        %v1405 = vsel %vm1109, %v601, 0.0
        %v1406 = vsel %vm1110, %v603, 0.0
        %v1407 = vsel %vm1111, %v605, 0.0
        %v1408 = vsel %vm1112, %v607, 0.0
        %v1409 = vsel %vm1113, %v609, 0.0
        %v1410 = vsel %vm1114, %v611, 0.0
        %v1411 = vsel %vm1115, %v613, 0.0
        %v1412 = vsel %vm1116, %v615, 0.0
        %v1413 = vsel %vm1117, %v617, 0.0
        %v1414 = vsel %vm1118, %v619, 0.0
        %v1415 = vsel %vm1119, %v621, 0.0
        %v1416 = vsel %vm1120, %v623, 0.0
        %v1417 = vsel %vm1121, %v625, 0.0
        %v1418 = vsel %vm1122, %v627, 0.0
        %v1419 = vsel %vm1123, %v629, 0.0
        %v1420 = vsel %vm1124, %v631, 0.0
        %v1421 = vsel %vm1125, %v633, 0.0
        %v1422 = vsel %vm1126, %v635, 0.0
        %v1423 = vsel %vm1127, %v637, 0.0
        %v1424 = vsel %vm1128, %v639, 0.0
        %v1425 = vsel %vm1129, %v641, 0.0
        %v1426 = vsel %vm1130, %v643, 0.0
        %v1427 = vsel %vm1131, %v645, 0.0
        %v1428 = vsel %vm1132, %v647, 0.0
        %v1429 = vsel %vm1133, %v649, 0.0
        %v1430 = vsel %vm1134, %v651, 0.0
        %v1431 = vsel %vm1135, %v653, 0.0
        %v1432 = vsel %vm1136, %v688, 0.0
        %v1433 = vsel %vm1202, %v1366, %v1203
        %v1435 = vsel %vm1138, %v1212, 0.0
        %v1436 = vsel %vm1139, %v1214, 0.0
        %v1437 = vsel %vm1140, %v1216, 0.0
        %v1438 = vsel %vm1141, %v1218, 0.0
        %v1439 = vsel %vm1142, %v1220, 0.0
        %v1440 = vsel %vm1143, %v1222, 0.0
        %v1441 = vsel %vm1144, %v1224, 0.0
        %v1442 = vsel %vm1145, %v1226, 0.0
        %v1443 = vsel %vm1146, %v1228, 0.0
        %v1444 = vsel %vm1147, %v1230, 0.0
        %v1445 = vsel %vm1148, %v1232, 0.0
        %v1446 = vsel %vm1149, %v1234, 0.0
        %v1447 = vsel %vm1150, %v1236, 0.0
        %v1448 = vsel %vm1151, %v1238, 0.0
        %v1449 = vsel %vm1152, %v1240, 0.0
        %v1450 = vsel %vm1153, %v1242, 0.0
        %v1451 = vsel %vm1154, %v1244, 0.0
        %v1452 = vsel %vm1155, %v1246, 0.0
        %v1453 = vsel %vm1156, %v1248, 0.0
        %v1454 = vsel %vm1157, %v1250, 0.0
        %v1455 = vsel %vm1158, %v1252, 0.0
        %v1456 = vsel %vm1159, %v1254, 0.0
        %v1457 = vsel %vm1160, %v1256, 0.0
        %v1458 = vsel %vm1161, %v1258, 0.0
        %v1459 = vsel %vm1162, %v1260, 0.0
        %v1460 = vsel %vm1163, %v1262, 0.0
        %v1461 = vsel %vm1164, %v1264, 0.0
        %v1462 = vsel %vm1165, %v1266, 0.0
        %v1463 = vsel %vm1166, %v1365, 0.0
        %v1464 = vsel %vm1167, %v1367, 0.0
        %v1465 = vsel %vm1168, %v1433, 0.0
        %v1466 = vsel %vm1169, %v1204, 0.0
        %vm1467 = vcmask 1046528
        %v1468 = vrot.slane 0.0, 1
        %v1469 = vsel %vm1467, %v1468, %v1468
        %v1470 = vrot.slane %v687, 1
        %v1471 = vsel %vm1467, %v1468, %v1470
        %v1472 = vrot.slane %v593, 1
        %v1473 = vsel %vm1467, %v1470, %v1472
        %v1474 = vrot.slane %v595, 1
        %v1475 = vsel %vm1467, %v1472, %v1474
        %v1476 = vrot.slane %v597, 1
        %v1477 = vsel %vm1467, %v1474, %v1476
        %v1478 = vrot.slane %v599, 1
        %v1479 = vsel %vm1467, %v1476, %v1478
        %v1480 = vrot.slane %v601, 1
        %v1481 = vsel %vm1467, %v1478, %v1480
        %v1482 = vrot.slane %v603, 1
        %v1483 = vsel %vm1467, %v1480, %v1482
        %v1484 = vrot.slane %v605, 1
        %v1485 = vsel %vm1467, %v1482, %v1484
        %v1486 = vrot.slane %v607, 1
        %v1487 = vsel %vm1467, %v1484, %v1486
        %v1488 = vrot.slane %v609, 1
        %v1489 = vsel %vm1467, %v1486, %v1488
        %v1490 = vrot.slane %v611, 1
        %v1491 = vsel %vm1467, %v1488, %v1490
        %v1492 = vrot.slane %v613, 1
        %v1493 = vsel %vm1467, %v1490, %v1492
        %v1494 = vrot.slane %v615, 1
        %v1495 = vsel %vm1467, %v1492, %v1494
        %v1496 = vrot.slane %v617, 1
        %v1497 = vsel %vm1467, %v1494, %v1496
        %v1498 = vrot.slane %v619, 1
        %v1499 = vsel %vm1467, %v1496, %v1498
        %v1500 = vrot.slane %v621, 1
        %v1501 = vsel %vm1467, %v1498, %v1500
        %v1502 = vrot.slane %v623, 1
        %v1503 = vsel %vm1467, %v1500, %v1502
        %v1504 = vrot.slane %v625, 1
        %v1505 = vsel %vm1467, %v1502, %v1504
        %v1506 = vrot.slane %v627, 1
        %v1507 = vsel %vm1467, %v1504, %v1506
        %v1508 = vrot.slane %v629, 1
        %v1509 = vsel %vm1467, %v1506, %v1508
        %v1510 = vrot.slane %v631, 1
        %v1511 = vsel %vm1467, %v1508, %v1510
        %v1512 = vrot.slane %v633, 1
        %v1513 = vsel %vm1467, %v1510, %v1512
        %v1514 = vrot.slane %v635, 1
        %v1515 = vsel %vm1467, %v1512, %v1514
        %v1516 = vrot.slane %v637, 1
        %v1517 = vsel %vm1467, %v1514, %v1516
        %v1518 = vrot.slane %v639, 1
        %v1519 = vsel %vm1467, %v1516, %v1518
        %v1520 = vrot.slane %v641, 1
        %v1521 = vsel %vm1467, %v1518, %v1520
        %v1522 = vrot.slane %v643, 1
        %v1523 = vsel %vm1467, %v1520, %v1522
        %v1524 = vrot.slane %v645, 1
        %v1525 = vsel %vm1467, %v1522, %v1524
        %v1526 = vrot.slane %v647, 1
        %v1527 = vsel %vm1467, %v1524, %v1526
        %v1528 = vrot.slane %v649, 1
        %v1529 = vsel %vm1467, %v1526, %v1528
        %v1530 = vrot.slane %v651, 1
        %v1531 = vsel %vm1467, %v1528, %v1530
        %1532 = vrot.lane.b32.xlu0 %v1469, 16
        %v1533 = vpop.permute.xlu0 %1532
        %1534 = vrot.lane.b32.xlu0 %v1471, 16
        %v1535 = vpop.permute.xlu0 %1534
        %1536 = vrot.lane.b32.xlu0 %v1473, 16
        %v1537 = vpop.permute.xlu0 %1536
        %1538 = vrot.lane.b32.xlu0 %v1475, 16
        %v1539 = vpop.permute.xlu0 %1538
        %1540 = vrot.lane.b32.xlu0 %v1477, 16
        %v1541 = vpop.permute.xlu0 %1540
        %1542 = vrot.lane.b32.xlu0 %v1479, 16
        %v1543 = vpop.permute.xlu0 %1542
        %1544 = vrot.lane.b32.xlu0 %v1481, 16
        %v1545 = vpop.permute.xlu0 %1544
        %1546 = vrot.lane.b32.xlu0 %v1483, 16
        %v1547 = vpop.permute.xlu0 %1546
        %1548 = vrot.lane.b32.xlu0 %v1485, 16
        %v1549 = vpop.permute.xlu0 %1548
        %1550 = vrot.lane.b32.xlu0 %v1487, 16
        %v1551 = vpop.permute.xlu0 %1550
        %1552 = vrot.lane.b32.xlu0 %v1489, 16
        %v1553 = vpop.permute.xlu0 %1552
        %1554 = vrot.lane.b32.xlu0 %v1491, 16
        %v1555 = vpop.permute.xlu0 %1554
        %1556 = vrot.lane.b32.xlu0 %v1493, 16
        %v1557 = vpop.permute.xlu0 %1556
        %1558 = vrot.lane.b32.xlu0 %v1495, 16
        %v1559 = vpop.permute.xlu0 %1558
        %1560 = vrot.lane.b32.xlu0 %v1497, 16
        %v1561 = vpop.permute.xlu0 %1560
        %1562 = vrot.lane.b32.xlu0 %v1499, 16
        %v1563 = vpop.permute.xlu0 %1562
        %1564 = vrot.lane.b32.xlu0 %v1501, 16
        %v1565 = vpop.permute.xlu0 %1564
        %1566 = vrot.lane.b32.xlu0 %v1503, 16
        %v1567 = vpop.permute.xlu0 %1566
        %1568 = vrot.lane.b32.xlu0 %v1505, 16
        %v1569 = vpop.permute.xlu0 %1568
        %1570 = vrot.lane.b32.xlu0 %v1507, 16
        %v1571 = vpop.permute.xlu0 %1570
        %1572 = vrot.lane.b32.xlu0 %v1509, 16
        %v1573 = vpop.permute.xlu0 %1572
        %1574 = vrot.lane.b32.xlu0 %v1511, 16
        %v1575 = vpop.permute.xlu0 %1574
        %1576 = vrot.lane.b32.xlu0 %v1513, 16
        %v1577 = vpop.permute.xlu0 %1576
        %1578 = vrot.lane.b32.xlu0 %v1515, 16
        %v1579 = vpop.permute.xlu0 %1578
        %1580 = vrot.lane.b32.xlu0 %v1517, 16
        %v1581 = vpop.permute.xlu0 %1580
        %1582 = vrot.lane.b32.xlu0 %v1519, 16
        %v1583 = vpop.permute.xlu0 %1582
        %1584 = vrot.lane.b32.xlu0 %v1521, 16
        %v1585 = vpop.permute.xlu0 %1584
        %1586 = vrot.lane.b32.xlu0 %v1523, 16
        %v1587 = vpop.permute.xlu0 %1586
        %1588 = vrot.lane.b32.xlu0 %v1525, 16
        %v1589 = vpop.permute.xlu0 %1588
        %1590 = vrot.lane.b32.xlu0 %v1527, 16
        %v1591 = vpop.permute.xlu0 %1590
        %1592 = vrot.lane.b32.xlu0 %v1529, 16
        %v1593 = vpop.permute.xlu0 %1592
        %1594 = vrot.lane.b32.xlu0 %v1531, 16
        %v1595 = vpop.permute.xlu0 %1594
        %1660 = vrot.lane.b32.xlu0 %v1299, 32
        %v1661 = vpop.permute.xlu0 %1660
        %1662 = vrot.lane.b32.xlu0 %v1300, 32
        %v1663 = vpop.permute.xlu0 %1662
        %1664 = vrot.lane.b32.xlu0 %v1301, 32
        %v1665 = vpop.permute.xlu0 %1664
        %1666 = vrot.lane.b32.xlu0 %v1302, 32
        %v1667 = vpop.permute.xlu0 %1666
        %1668 = vrot.lane.b32.xlu0 %v1303, 32
        %v1669 = vpop.permute.xlu0 %1668
        %1670 = vrot.lane.b32.xlu0 %v1304, 32
        %v1671 = vpop.permute.xlu0 %1670
        %1672 = vrot.lane.b32.xlu0 %v1305, 32
        %v1673 = vpop.permute.xlu0 %1672
        %1674 = vrot.lane.b32.xlu0 %v1306, 32
        %v1675 = vpop.permute.xlu0 %1674
        %1676 = vrot.lane.b32.xlu0 %v1307, 32
        %v1677 = vpop.permute.xlu0 %1676
        %1678 = vrot.lane.b32.xlu0 %v1308, 32
        %v1679 = vpop.permute.xlu0 %1678
        %1680 = vrot.lane.b32.xlu0 %v1309, 32
        %v1681 = vpop.permute.xlu0 %1680
        %1682 = vrot.lane.b32.xlu0 %v1310, 32
        %v1683 = vpop.permute.xlu0 %1682
        %1684 = vrot.lane.b32.xlu0 %v1311, 32
        %v1685 = vpop.permute.xlu0 %1684
        %1686 = vrot.lane.b32.xlu0 %v1312, 32
        %v1687 = vpop.permute.xlu0 %1686
        %1688 = vrot.lane.b32.xlu0 %v1313, 32
        %v1689 = vpop.permute.xlu0 %1688
        %1690 = vrot.lane.b32.xlu0 %v1314, 32
        %v1691 = vpop.permute.xlu0 %1690
        %1692 = vrot.lane.b32.xlu0 %v1315, 32
        %v1693 = vpop.permute.xlu0 %1692
        %1694 = vrot.lane.b32.xlu0 %v1316, 32
        %v1695 = vpop.permute.xlu0 %1694
        %1696 = vrot.lane.b32.xlu0 %v1317, 32
        %v1697 = vpop.permute.xlu0 %1696
        %1698 = vrot.lane.b32.xlu0 %v1318, 32
        %v1699 = vpop.permute.xlu0 %1698
        %1700 = vrot.lane.b32.xlu0 %v1319, 32
        %v1701 = vpop.permute.xlu0 %1700
        %1702 = vrot.lane.b32.xlu0 %v1320, 32
        %v1703 = vpop.permute.xlu0 %1702
        %1704 = vrot.lane.b32.xlu0 %v1321, 32
        %v1705 = vpop.permute.xlu0 %1704
        %1706 = vrot.lane.b32.xlu0 %v1322, 32
        %v1707 = vpop.permute.xlu0 %1706
        %1708 = vrot.lane.b32.xlu0 %v1323, 32
        %v1709 = vpop.permute.xlu0 %1708
        %1710 = vrot.lane.b32.xlu0 %v1324, 32
        %v1711 = vpop.permute.xlu0 %1710
        %1712 = vrot.lane.b32.xlu0 %v1325, 32
        %v1713 = vpop.permute.xlu0 %1712
        %1714 = vrot.lane.b32.xlu0 %v1326, 32
        %v1715 = vpop.permute.xlu0 %1714
        %1716 = vrot.lane.b32.xlu0 %v1327, 32
        %v1717 = vpop.permute.xlu0 %1716
        %1718 = vrot.lane.b32.xlu0 %v1328, 32
        %v1719 = vpop.permute.xlu0 %1718
        %1720 = vrot.lane.b32.xlu0 %v1329, 32
        %v1721 = vpop.permute.xlu0 %1720
        %1722 = vrot.lane.b32.xlu0 %v1330, 32
        %v1723 = vpop.permute.xlu0 %1722
        %1788 = vrot.lane.b32.xlu0 %v1331, 48
        %v1789 = vpop.permute.xlu0 %1788
        %1790 = vrot.lane.b32.xlu0 %v1332, 48
        %v1791 = vpop.permute.xlu0 %1790
        %1792 = vrot.lane.b32.xlu0 %v1333, 48
        %v1793 = vpop.permute.xlu0 %1792
        %1794 = vrot.lane.b32.xlu0 %v1334, 48
        %v1795 = vpop.permute.xlu0 %1794
        %1796 = vrot.lane.b32.xlu0 %v1335, 48
        %v1797 = vpop.permute.xlu0 %1796
        %1798 = vrot.lane.b32.xlu0 %v1336, 48
        %v1799 = vpop.permute.xlu0 %1798
        %1800 = vrot.lane.b32.xlu0 %v1337, 48
        %v1801 = vpop.permute.xlu0 %1800
        %1802 = vrot.lane.b32.xlu0 %v1338, 48
        %v1803 = vpop.permute.xlu0 %1802
        %1804 = vrot.lane.b32.xlu0 %v1339, 48
        %v1805 = vpop.permute.xlu0 %1804
        %1806 = vrot.lane.b32.xlu0 %v1340, 48
        %v1807 = vpop.permute.xlu0 %1806
        %1808 = vrot.lane.b32.xlu0 %v1341, 48
        %v1809 = vpop.permute.xlu0 %1808
        %1810 = vrot.lane.b32.xlu0 %v1342, 48
        %v1811 = vpop.permute.xlu0 %1810
        %1812 = vrot.lane.b32.xlu0 %v1343, 48
        %v1813 = vpop.permute.xlu0 %1812
        %1814 = vrot.lane.b32.xlu0 %v1344, 48
        %v1815 = vpop.permute.xlu0 %1814
        %1816 = vrot.lane.b32.xlu0 %v1345, 48
        %v1817 = vpop.permute.xlu0 %1816
        %1818 = vrot.lane.b32.xlu0 %v1346, 48
        %v1819 = vpop.permute.xlu0 %1818
        %1820 = vrot.lane.b32.xlu0 %v1347, 48
        %v1821 = vpop.permute.xlu0 %1820
        %1822 = vrot.lane.b32.xlu0 %v1348, 48
        %v1823 = vpop.permute.xlu0 %1822
        %1824 = vrot.lane.b32.xlu0 %v1349, 48
        %v1825 = vpop.permute.xlu0 %1824
        %1826 = vrot.lane.b32.xlu0 %v1350, 48
        %v1827 = vpop.permute.xlu0 %1826
        %1828 = vrot.lane.b32.xlu0 %v1351, 48
        %v1829 = vpop.permute.xlu0 %1828
        %1830 = vrot.lane.b32.xlu0 %v1352, 48
        %v1831 = vpop.permute.xlu0 %1830
        %1832 = vrot.lane.b32.xlu0 %v1353, 48
        %v1833 = vpop.permute.xlu0 %1832
        %1834 = vrot.lane.b32.xlu0 %v1354, 48
        %v1835 = vpop.permute.xlu0 %1834
        %1836 = vrot.lane.b32.xlu0 %v1355, 48
        %v1837 = vpop.permute.xlu0 %1836
        %1838 = vrot.lane.b32.xlu0 %v1356, 48
        %v1839 = vpop.permute.xlu0 %1838
        %1840 = vrot.lane.b32.xlu0 %v1357, 48
        %v1841 = vpop.permute.xlu0 %1840
        %1842 = vrot.lane.b32.xlu0 %v1358, 48
        %v1843 = vpop.permute.xlu0 %1842
        %1844 = vrot.lane.b32.xlu0 %v1359, 48
        %v1845 = vpop.permute.xlu0 %1844
        %1846 = vrot.lane.b32.xlu0 %v1360, 48
        %v1847 = vpop.permute.xlu0 %1846
        %1848 = vrot.lane.b32.xlu0 %v1361, 48
        %v1849 = vpop.permute.xlu0 %1848
        %1850 = vrot.lane.b32.xlu0 %v1362, 48
        %v1851 = vpop.permute.xlu0 %1850
        %v1884 = vrot.slane %v653, 1
        %v1885 = vsel %vm1467, %v1530, %v1884
        %v1886 = vrot.slane %v688, 1
        %v1887 = vsel %vm1467, %v1884, %v1886
        %1888 = vrot.lane.b32.xlu0 %v1473, 64
        %v1889 = vpop.permute.xlu0 %1888
        %1890 = vrot.lane.b32.xlu0 %v1475, 64
        %v1891 = vpop.permute.xlu0 %1890
        %1892 = vrot.lane.b32.xlu0 %v1477, 64
        %v1893 = vpop.permute.xlu0 %1892
        %1894 = vrot.lane.b32.xlu0 %v1479, 64
        %v1895 = vpop.permute.xlu0 %1894
        %1896 = vrot.lane.b32.xlu0 %v1481, 64
        %v1897 = vpop.permute.xlu0 %1896
        %1898 = vrot.lane.b32.xlu0 %v1483, 64
        %v1899 = vpop.permute.xlu0 %1898
        %1900 = vrot.lane.b32.xlu0 %v1485, 64
        %v1901 = vpop.permute.xlu0 %1900
        %1902 = vrot.lane.b32.xlu0 %v1487, 64
        %v1903 = vpop.permute.xlu0 %1902
        %1904 = vrot.lane.b32.xlu0 %v1489, 64
        %v1905 = vpop.permute.xlu0 %1904
        %1906 = vrot.lane.b32.xlu0 %v1491, 64
        %v1907 = vpop.permute.xlu0 %1906
        %1908 = vrot.lane.b32.xlu0 %v1493, 64
        %v1909 = vpop.permute.xlu0 %1908
        %1910 = vrot.lane.b32.xlu0 %v1495, 64
        %v1911 = vpop.permute.xlu0 %1910
        %1912 = vrot.lane.b32.xlu0 %v1497, 64
        %v1913 = vpop.permute.xlu0 %1912
        %1914 = vrot.lane.b32.xlu0 %v1499, 64
        %v1915 = vpop.permute.xlu0 %1914
        %1916 = vrot.lane.b32.xlu0 %v1501, 64
        %v1917 = vpop.permute.xlu0 %1916
        %1918 = vrot.lane.b32.xlu0 %v1503, 64
        %v1919 = vpop.permute.xlu0 %1918
        %1920 = vrot.lane.b32.xlu0 %v1505, 64
        %v1921 = vpop.permute.xlu0 %1920
        %1922 = vrot.lane.b32.xlu0 %v1507, 64
        %v1923 = vpop.permute.xlu0 %1922
        %1924 = vrot.lane.b32.xlu0 %v1509, 64
        %v1925 = vpop.permute.xlu0 %1924
        %1926 = vrot.lane.b32.xlu0 %v1511, 64
        %v1927 = vpop.permute.xlu0 %1926
        %1928 = vrot.lane.b32.xlu0 %v1513, 64
        %v1929 = vpop.permute.xlu0 %1928
        %1930 = vrot.lane.b32.xlu0 %v1515, 64
        %v1931 = vpop.permute.xlu0 %1930
        %1932 = vrot.lane.b32.xlu0 %v1517, 64
        %v1933 = vpop.permute.xlu0 %1932
        %1934 = vrot.lane.b32.xlu0 %v1519, 64
        %v1935 = vpop.permute.xlu0 %1934
        %1936 = vrot.lane.b32.xlu0 %v1521, 64
        %v1937 = vpop.permute.xlu0 %1936
        %1938 = vrot.lane.b32.xlu0 %v1523, 64
        %v1939 = vpop.permute.xlu0 %1938
        %1940 = vrot.lane.b32.xlu0 %v1525, 64
        %v1941 = vpop.permute.xlu0 %1940
        %1942 = vrot.lane.b32.xlu0 %v1527, 64
        %v1943 = vpop.permute.xlu0 %1942
        %1944 = vrot.lane.b32.xlu0 %v1529, 64
        %v1945 = vpop.permute.xlu0 %1944
        %1946 = vrot.lane.b32.xlu0 %v1531, 64
        %v1947 = vpop.permute.xlu0 %1946
        %1948 = vrot.lane.b32.xlu0 %v1885, 64
        %v1949 = vpop.permute.xlu0 %1948
        %1950 = vrot.lane.b32.xlu0 %v1887, 64
        %v1951 = vpop.permute.xlu0 %1950
        %2016 = vrot.lane.b32.xlu0 %v1370, 80
        %v2017 = vpop.permute.xlu0 %2016
        %2018 = vrot.lane.b32.xlu0 %v1371, 80
        %v2019 = vpop.permute.xlu0 %2018
        %2020 = vrot.lane.b32.xlu0 %v1372, 80
        %v2021 = vpop.permute.xlu0 %2020
        %2022 = vrot.lane.b32.xlu0 %v1373, 80
        %v2023 = vpop.permute.xlu0 %2022
        %2024 = vrot.lane.b32.xlu0 %v1374, 80
        %v2025 = vpop.permute.xlu0 %2024
        %2026 = vrot.lane.b32.xlu0 %v1375, 80
        %v2027 = vpop.permute.xlu0 %2026
        %2028 = vrot.lane.b32.xlu0 %v1376, 80
        %v2029 = vpop.permute.xlu0 %2028
        %2030 = vrot.lane.b32.xlu0 %v1377, 80
        %v2031 = vpop.permute.xlu0 %2030
        %2032 = vrot.lane.b32.xlu0 %v1378, 80
        %v2033 = vpop.permute.xlu0 %2032
        %2034 = vrot.lane.b32.xlu0 %v1379, 80
        %v2035 = vpop.permute.xlu0 %2034
        %2036 = vrot.lane.b32.xlu0 %v1380, 80
        %v2037 = vpop.permute.xlu0 %2036
        %2038 = vrot.lane.b32.xlu0 %v1381, 80
        %v2039 = vpop.permute.xlu0 %2038
        %2040 = vrot.lane.b32.xlu0 %v1382, 80
        %v2041 = vpop.permute.xlu0 %2040
        %2042 = vrot.lane.b32.xlu0 %v1383, 80
        %v2043 = vpop.permute.xlu0 %2042
        %2044 = vrot.lane.b32.xlu0 %v1384, 80
        %v2045 = vpop.permute.xlu0 %2044
        %2046 = vrot.lane.b32.xlu0 %v1385, 80
        %v2047 = vpop.permute.xlu0 %2046
        %2048 = vrot.lane.b32.xlu0 %v1386, 80
        %v2049 = vpop.permute.xlu0 %2048
        %2050 = vrot.lane.b32.xlu0 %v1387, 80
        %v2051 = vpop.permute.xlu0 %2050
        %2052 = vrot.lane.b32.xlu0 %v1388, 80
        %v2053 = vpop.permute.xlu0 %2052
        %2054 = vrot.lane.b32.xlu0 %v1389, 80
        %v2055 = vpop.permute.xlu0 %2054
        %2056 = vrot.lane.b32.xlu0 %v1390, 80
        %v2057 = vpop.permute.xlu0 %2056
        %2058 = vrot.lane.b32.xlu0 %v1391, 80
        %v2059 = vpop.permute.xlu0 %2058
        %2060 = vrot.lane.b32.xlu0 %v1392, 80
        %v2061 = vpop.permute.xlu0 %2060
        %2062 = vrot.lane.b32.xlu0 %v1393, 80
        %v2063 = vpop.permute.xlu0 %2062
        %2064 = vrot.lane.b32.xlu0 %v1394, 80
        %v2065 = vpop.permute.xlu0 %2064
        %2066 = vrot.lane.b32.xlu0 %v1395, 80
        %v2067 = vpop.permute.xlu0 %2066
        %2068 = vrot.lane.b32.xlu0 %v1396, 80
        %v2069 = vpop.permute.xlu0 %2068
        %2070 = vrot.lane.b32.xlu0 %v1397, 80
        %v2071 = vpop.permute.xlu0 %2070
        %2072 = vrot.lane.b32.xlu0 %v1398, 80
        %v2073 = vpop.permute.xlu0 %2072
        %2074 = vrot.lane.b32.xlu0 %v1399, 80
        %v2075 = vpop.permute.xlu0 %2074
        %2076 = vrot.lane.b32.xlu0 %v1400, 80
        %v2077 = vpop.permute.xlu0 %2076
        %2078 = vrot.lane.b32.xlu0 %v1401, 80
        %v2079 = vpop.permute.xlu0 %2078
        %2143 = vrot.lane.b32.xlu0 %v1402, 96
        %v2144 = vpop.permute.xlu0 %2143
        %2145 = vrot.lane.b32.xlu0 %v1403, 96
        %v2146 = vpop.permute.xlu0 %2145
        %2147 = vrot.lane.b32.xlu0 %v1404, 96
        %v2148 = vpop.permute.xlu0 %2147
        %2149 = vrot.lane.b32.xlu0 %v1405, 96
        %v2150 = vpop.permute.xlu0 %2149
        %2151 = vrot.lane.b32.xlu0 %v1406, 96
        %v2152 = vpop.permute.xlu0 %2151
        %2153 = vrot.lane.b32.xlu0 %v1407, 96
        %v2154 = vpop.permute.xlu0 %2153
        %2155 = vrot.lane.b32.xlu0 %v1408, 96
        %v2156 = vpop.permute.xlu0 %2155
        %2157 = vrot.lane.b32.xlu0 %v1409, 96
        %v2158 = vpop.permute.xlu0 %2157
        %2159 = vrot.lane.b32.xlu0 %v1410, 96
        %v2160 = vpop.permute.xlu0 %2159
        %2161 = vrot.lane.b32.xlu0 %v1411, 96
        %v2162 = vpop.permute.xlu0 %2161
        %2163 = vrot.lane.b32.xlu0 %v1412, 96
        %v2164 = vpop.permute.xlu0 %2163
        %2165 = vrot.lane.b32.xlu0 %v1413, 96
        %v2166 = vpop.permute.xlu0 %2165
        %2167 = vrot.lane.b32.xlu0 %v1414, 96
        %v2168 = vpop.permute.xlu0 %2167
        %2169 = vrot.lane.b32.xlu0 %v1415, 96
        %v2170 = vpop.permute.xlu0 %2169
        %2171 = vrot.lane.b32.xlu0 %v1416, 96
        %v2172 = vpop.permute.xlu0 %2171
        %2173 = vrot.lane.b32.xlu0 %v1417, 96
        %v2174 = vpop.permute.xlu0 %2173
        %2175 = vrot.lane.b32.xlu0 %v1418, 96
        %v2176 = vpop.permute.xlu0 %2175
        %2177 = vrot.lane.b32.xlu0 %v1419, 96
        %v2178 = vpop.permute.xlu0 %2177
        %2179 = vrot.lane.b32.xlu0 %v1420, 96
        %v2180 = vpop.permute.xlu0 %2179
        %2181 = vrot.lane.b32.xlu0 %v1421, 96
        %v2182 = vpop.permute.xlu0 %2181
        %2183 = vrot.lane.b32.xlu0 %v1422, 96
        %v2184 = vpop.permute.xlu0 %2183
        %2185 = vrot.lane.b32.xlu0 %v1423, 96
        %v2186 = vpop.permute.xlu0 %2185
        %2187 = vrot.lane.b32.xlu0 %v1424, 96
        %v2188 = vpop.permute.xlu0 %2187
        %2189 = vrot.lane.b32.xlu0 %v1425, 96
        %v2190 = vpop.permute.xlu0 %2189
        %2191 = vrot.lane.b32.xlu0 %v1426, 96
        %v2192 = vpop.permute.xlu0 %2191
        %2193 = vrot.lane.b32.xlu0 %v1427, 96
        %v2194 = vpop.permute.xlu0 %2193
        %2195 = vrot.lane.b32.xlu0 %v1428, 96
        %v2196 = vpop.permute.xlu0 %2195
        %2197 = vrot.lane.b32.xlu0 %v1429, 96
        %v2198 = vpop.permute.xlu0 %2197
        %2199 = vrot.lane.b32.xlu0 %v1430, 96
        %v2200 = vpop.permute.xlu0 %2199
        %2201 = vrot.lane.b32.xlu0 %v1431, 96
        %v2202 = vpop.permute.xlu0 %2201
        %2203 = vrot.lane.b32.xlu0 %v1432, 96
        %v2204 = vpop.permute.xlu0 %2203
        %2205 = vrot.lane.b32.xlu0 0.0, 96
        %v2206 = vpop.permute.xlu0 %2205
        %v2239 = vsel %vm1467, %v1886, %v1468
        %2240 = vrot.lane.b32.xlu0 %v1477, 112
        %v2241 = vpop.permute.xlu0 %2240
        %2242 = vrot.lane.b32.xlu0 %v1479, 112
        %v2243 = vpop.permute.xlu0 %2242
        %2244 = vrot.lane.b32.xlu0 %v1481, 112
        %v2245 = vpop.permute.xlu0 %2244
        %2246 = vrot.lane.b32.xlu0 %v1483, 112
        %v2247 = vpop.permute.xlu0 %2246
        %2248 = vrot.lane.b32.xlu0 %v1485, 112
        %v2249 = vpop.permute.xlu0 %2248
        %2250 = vrot.lane.b32.xlu0 %v1487, 112
        %v2251 = vpop.permute.xlu0 %2250
        %2252 = vrot.lane.b32.xlu0 %v1489, 112
        %v2253 = vpop.permute.xlu0 %2252
        %2254 = vrot.lane.b32.xlu0 %v1491, 112
        %v2255 = vpop.permute.xlu0 %2254
        %2256 = vrot.lane.b32.xlu0 %v1493, 112
        %v2257 = vpop.permute.xlu0 %2256
        %2258 = vrot.lane.b32.xlu0 %v1495, 112
        %v2259 = vpop.permute.xlu0 %2258
        %2260 = vrot.lane.b32.xlu0 %v1497, 112
        %v2261 = vpop.permute.xlu0 %2260
        %2262 = vrot.lane.b32.xlu0 %v1499, 112
        %v2263 = vpop.permute.xlu0 %2262
        %2264 = vrot.lane.b32.xlu0 %v1501, 112
        %v2265 = vpop.permute.xlu0 %2264
        %2266 = vrot.lane.b32.xlu0 %v1503, 112
        %v2267 = vpop.permute.xlu0 %2266
        %2268 = vrot.lane.b32.xlu0 %v1505, 112
        %v2269 = vpop.permute.xlu0 %2268
        %2270 = vrot.lane.b32.xlu0 %v1507, 112
        %v2271 = vpop.permute.xlu0 %2270
        %2272 = vrot.lane.b32.xlu0 %v1509, 112
        %v2273 = vpop.permute.xlu0 %2272
        %2274 = vrot.lane.b32.xlu0 %v1511, 112
        %v2275 = vpop.permute.xlu0 %2274
        %2276 = vrot.lane.b32.xlu0 %v1513, 112
        %v2277 = vpop.permute.xlu0 %2276
        %2278 = vrot.lane.b32.xlu0 %v1515, 112
        %v2279 = vpop.permute.xlu0 %2278
        %2280 = vrot.lane.b32.xlu0 %v1517, 112
        %v2281 = vpop.permute.xlu0 %2280
        %2282 = vrot.lane.b32.xlu0 %v1519, 112
        %v2283 = vpop.permute.xlu0 %2282
        %2284 = vrot.lane.b32.xlu0 %v1521, 112
        %v2285 = vpop.permute.xlu0 %2284
        %2286 = vrot.lane.b32.xlu0 %v1523, 112
        %v2287 = vpop.permute.xlu0 %2286
        %2288 = vrot.lane.b32.xlu0 %v1525, 112
        %v2289 = vpop.permute.xlu0 %2288
        %2290 = vrot.lane.b32.xlu0 %v1527, 112
        %v2291 = vpop.permute.xlu0 %2290
        %2292 = vrot.lane.b32.xlu0 %v1529, 112
        %v2293 = vpop.permute.xlu0 %2292
        %2294 = vrot.lane.b32.xlu0 %v1531, 112
        %v2295 = vpop.permute.xlu0 %2294
        %2296 = vrot.lane.b32.xlu0 %v1885, 112
        %v2297 = vpop.permute.xlu0 %2296
        %2298 = vrot.lane.b32.xlu0 %v1887, 112
        %v2299 = vpop.permute.xlu0 %2298
        %2300 = vrot.lane.b32.xlu0 %v2239, 112
        %v2301 = vpop.permute.xlu0 %2300
        %2302 = vrot.lane.b32.xlu0 %v1469, 112
        %v2303 = vpop.permute.xlu0 %2302
        %vm2336 = vcmask 130048
        %v2337 = vsel %vm2336, 0.0, %v1533
        %v2338 = vsel %vm2336, 0.0, %v1535
        %v2339 = vsel %vm2336, %v1170, %v1537
        %v2340 = vsel %vm2336, %v1171, %v1539
        %v2341 = vsel %vm2336, %v1172, %v1541
        %v2342 = vsel %vm2336, %v1173, %v1543
        %v2343 = vsel %vm2336, %v1174, %v1545
        %v2344 = vsel %vm2336, %v1175, %v1547
        %v2345 = vsel %vm2336, %v1176, %v1549
        %v2346 = vsel %vm2336, %v1177, %v1551
        %v2347 = vsel %vm2336, %v1178, %v1553
        %v2348 = vsel %vm2336, %v1179, %v1555
        %v2349 = vsel %vm2336, %v1180, %v1557
        %v2350 = vsel %vm2336, %v1181, %v1559
        %v2351 = vsel %vm2336, %v1182, %v1561
        %v2352 = vsel %vm2336, %v1183, %v1563
        %v2353 = vsel %vm2336, %v1184, %v1565
        %v2354 = vsel %vm2336, %v1185, %v1567
        %v2355 = vsel %vm2336, %v1186, %v1569
        %v2356 = vsel %vm2336, %v1187, %v1571
        %v2357 = vsel %vm2336, %v1188, %v1573
        %v2358 = vsel %vm2336, %v1189, %v1575
        %v2359 = vsel %vm2336, %v1190, %v1577
        %v2360 = vsel %vm2336, %v1191, %v1579
        %v2361 = vsel %vm2336, %v1192, %v1581
        %v2362 = vsel %vm2336, %v1193, %v1583
        %v2363 = vsel %vm2336, %v1194, %v1585
        %v2364 = vsel %vm2336, %v1195, %v1587
        %v2365 = vsel %vm2336, %v1196, %v1589
        %v2366 = vsel %vm2336, %v1197, %v1591
        %v2367 = vsel %vm2336, %v1198, %v1593
        %v2368 = vsel %vm2336, %v1199, %v1595
        %vm2369 = vcmask 261120
        %v2370 = vsel %vm2369, %v2337, %v1661
        %v2371 = vsel %vm2369, %v2338, %v1663
        %v2372 = vsel %vm2369, %v2339, %v1665
        %v2373 = vsel %vm2369, %v2340, %v1667
        %v2374 = vsel %vm2369, %v2341, %v1669
        %v2375 = vsel %vm2369, %v2342, %v1671
        %v2376 = vsel %vm2369, %v2343, %v1673
        %v2377 = vsel %vm2369, %v2344, %v1675
        %v2378 = vsel %vm2369, %v2345, %v1677
        %v2379 = vsel %vm2369, %v2346, %v1679
        %v2380 = vsel %vm2369, %v2347, %v1681
        %v2381 = vsel %vm2369, %v2348, %v1683
        %v2382 = vsel %vm2369, %v2349, %v1685
        %v2383 = vsel %vm2369, %v2350, %v1687
        %v2384 = vsel %vm2369, %v2351, %v1689
        %v2385 = vsel %vm2369, %v2352, %v1691
        %v2386 = vsel %vm2369, %v2353, %v1693
        %v2387 = vsel %vm2369, %v2354, %v1695
        %v2388 = vsel %vm2369, %v2355, %v1697
        %v2389 = vsel %vm2369, %v2356, %v1699
        %v2390 = vsel %vm2369, %v2357, %v1701
        %v2391 = vsel %vm2369, %v2358, %v1703
        %v2392 = vsel %vm2369, %v2359, %v1705
        %v2393 = vsel %vm2369, %v2360, %v1707
        %v2394 = vsel %vm2369, %v2361, %v1709
        %v2395 = vsel %vm2369, %v2362, %v1711
        %v2396 = vsel %vm2369, %v2363, %v1713
        %v2397 = vsel %vm2369, %v2364, %v1715
        %v2398 = vsel %vm2369, %v2365, %v1717
        %v2399 = vsel %vm2369, %v2366, %v1719
        %v2400 = vsel %vm2369, %v2367, %v1721
        %v2401 = vsel %vm2369, %v2368, %v1723
        %vm2402 = vcmask 392192
        %v2403 = vsel %vm2402, %v2370, %v1789
        %v2404 = vsel %vm2402, %v2371, %v1791
        %v2405 = vsel %vm2402, %v2372, %v1793
        %v2406 = vsel %vm2402, %v2373, %v1795
        %v2407 = vsel %vm2402, %v2374, %v1797
        %v2408 = vsel %vm2402, %v2375, %v1799
        %v2409 = vsel %vm2402, %v2376, %v1801
        %v2410 = vsel %vm2402, %v2377, %v1803
        %v2411 = vsel %vm2402, %v2378, %v1805
        %v2412 = vsel %vm2402, %v2379, %v1807
        %v2413 = vsel %vm2402, %v2380, %v1809
        %v2414 = vsel %vm2402, %v2381, %v1811
        %v2415 = vsel %vm2402, %v2382, %v1813
        %v2416 = vsel %vm2402, %v2383, %v1815
        %v2417 = vsel %vm2402, %v2384, %v1817
        %v2418 = vsel %vm2402, %v2385, %v1819
        %v2419 = vsel %vm2402, %v2386, %v1821
        %v2420 = vsel %vm2402, %v2387, %v1823
        %v2421 = vsel %vm2402, %v2388, %v1825
        %v2422 = vsel %vm2402, %v2389, %v1827
        %v2423 = vsel %vm2402, %v2390, %v1829
        %v2424 = vsel %vm2402, %v2391, %v1831
        %v2425 = vsel %vm2402, %v2392, %v1833
        %v2426 = vsel %vm2402, %v2393, %v1835
        %v2427 = vsel %vm2402, %v2394, %v1837
        %v2428 = vsel %vm2402, %v2395, %v1839
        %v2429 = vsel %vm2402, %v2396, %v1841
        %v2430 = vsel %vm2402, %v2397, %v1843
        %v2431 = vsel %vm2402, %v2398, %v1845
        %v2432 = vsel %vm2402, %v2399, %v1847
        %v2433 = vsel %vm2402, %v2400, %v1849
        %v2434 = vsel %vm2402, %v2401, %v1851
        %vm2435 = vcmask 523264
        %v2436 = vsel %vm2435, %v2403, %v1889
        %v2437 = vsel %vm2435, %v2404, %v1891
        %v2438 = vsel %vm2435, %v2405, %v1893
        %v2439 = vsel %vm2435, %v2406, %v1895
        %v2440 = vsel %vm2435, %v2407, %v1897
        %v2441 = vsel %vm2435, %v2408, %v1899
        %v2442 = vsel %vm2435, %v2409, %v1901
        %v2443 = vsel %vm2435, %v2410, %v1903
        %v2444 = vsel %vm2435, %v2411, %v1905
        %v2445 = vsel %vm2435, %v2412, %v1907
        %v2446 = vsel %vm2435, %v2413, %v1909
        %v2447 = vsel %vm2435, %v2414, %v1911
        %v2448 = vsel %vm2435, %v2415, %v1913
        %v2449 = vsel %vm2435, %v2416, %v1915
        %v2450 = vsel %vm2435, %v2417, %v1917
        %v2451 = vsel %vm2435, %v2418, %v1919
        %v2452 = vsel %vm2435, %v2419, %v1921
        %v2453 = vsel %vm2435, %v2420, %v1923
        %v2454 = vsel %vm2435, %v2421, %v1925
        %v2455 = vsel %vm2435, %v2422, %v1927
        %v2456 = vsel %vm2435, %v2423, %v1929
        %v2457 = vsel %vm2435, %v2424, %v1931
        %v2458 = vsel %vm2435, %v2425, %v1933
        %v2459 = vsel %vm2435, %v2426, %v1935
        %v2460 = vsel %vm2435, %v2427, %v1937
        %v2461 = vsel %vm2435, %v2428, %v1939
        %v2462 = vsel %vm2435, %v2429, %v1941
        %v2463 = vsel %vm2435, %v2430, %v1943
        %v2464 = vsel %vm2435, %v2431, %v1945
        %v2465 = vsel %vm2435, %v2432, %v1947
        %v2466 = vsel %vm2435, %v2433, %v1949
        %v2467 = vsel %vm2435, %v2434, %v1951
        %vm2468 = vcmask 654336
        %v2469 = vsel %vm2468, %v2436, %v2017
        %v2470 = vsel %vm2468, %v2437, %v2019
        %v2471 = vsel %vm2468, %v2438, %v2021
        %v2472 = vsel %vm2468, %v2439, %v2023
        %v2473 = vsel %vm2468, %v2440, %v2025
        %v2474 = vsel %vm2468, %v2441, %v2027
        %v2475 = vsel %vm2468, %v2442, %v2029
        %v2476 = vsel %vm2468, %v2443, %v2031
        %v2477 = vsel %vm2468, %v2444, %v2033
        %v2478 = vsel %vm2468, %v2445, %v2035
        %v2479 = vsel %vm2468, %v2446, %v2037
        %v2480 = vsel %vm2468, %v2447, %v2039
        %v2481 = vsel %vm2468, %v2448, %v2041
        %v2482 = vsel %vm2468, %v2449, %v2043
        %v2483 = vsel %vm2468, %v2450, %v2045
        %v2484 = vsel %vm2468, %v2451, %v2047
        %v2485 = vsel %vm2468, %v2452, %v2049
        %v2486 = vsel %vm2468, %v2453, %v2051
        %v2487 = vsel %vm2468, %v2454, %v2053
        %v2488 = vsel %vm2468, %v2455, %v2055
        %v2489 = vsel %vm2468, %v2456, %v2057
        %v2490 = vsel %vm2468, %v2457, %v2059
        %v2491 = vsel %vm2468, %v2458, %v2061
        %v2492 = vsel %vm2468, %v2459, %v2063
        %v2493 = vsel %vm2468, %v2460, %v2065
        %v2494 = vsel %vm2468, %v2461, %v2067
        %v2495 = vsel %vm2468, %v2462, %v2069
        %v2496 = vsel %vm2468, %v2463, %v2071
        %v2497 = vsel %vm2468, %v2464, %v2073
        %v2498 = vsel %vm2468, %v2465, %v2075
        %v2499 = vsel %vm2468, %v2466, %v2077
        %v2500 = vsel %vm2468, %v2467, %v2079
        %v2501 = vsel %vm388, %v2469, %v2144
        %v2502 = vsel %vm388, %v2470, %v2146
        %v2503 = vsel %vm388, %v2471, %v2148
        %v2504 = vsel %vm388, %v2472, %v2150
        %v2505 = vsel %vm388, %v2473, %v2152
        %v2506 = vsel %vm388, %v2474, %v2154
        %v2507 = vsel %vm388, %v2475, %v2156
        %v2508 = vsel %vm388, %v2476, %v2158
        %v2509 = vsel %vm388, %v2477, %v2160
        %v2510 = vsel %vm388, %v2478, %v2162
        %v2511 = vsel %vm388, %v2479, %v2164
        %v2512 = vsel %vm388, %v2480, %v2166
        %v2513 = vsel %vm388, %v2481, %v2168
        %v2514 = vsel %vm388, %v2482, %v2170
        %v2515 = vsel %vm388, %v2483, %v2172
        %v2516 = vsel %vm388, %v2484, %v2174
        %v2517 = vsel %vm388, %v2485, %v2176
        %v2518 = vsel %vm388, %v2486, %v2178
        %v2519 = vsel %vm388, %v2487, %v2180
        %v2520 = vsel %vm388, %v2488, %v2182
        %v2521 = vsel %vm388, %v2489, %v2184
        %v2522 = vsel %vm388, %v2490, %v2186
        %v2523 = vsel %vm388, %v2491, %v2188
        %v2524 = vsel %vm388, %v2492, %v2190
        %v2525 = vsel %vm388, %v2493, %v2192
        %v2526 = vsel %vm388, %v2494, %v2194
        %v2527 = vsel %vm388, %v2495, %v2196
        %v2528 = vsel %vm388, %v2496, %v2198
        %v2529 = vsel %vm388, %v2497, %v2200
        %v2530 = vsel %vm388, %v2498, %v2202
        %v2531 = vsel %vm388, %v2499, %v2204
        %v2532 = vsel %vm388, %v2500, %v2206
        %vm2533 = vcmask 916480
        %v2534 = vsel %vm2533, %v2501, %v2241
        %v2535 = vsel %vm2533, %v2502, %v2243
        %v2536 = vsel %vm2533, %v2503, %v2245
        %v2537 = vsel %vm2533, %v2504, %v2247
        %v2538 = vsel %vm2533, %v2505, %v2249
        %v2539 = vsel %vm2533, %v2506, %v2251
        %v2540 = vsel %vm2533, %v2507, %v2253
        %v2541 = vsel %vm2533, %v2508, %v2255
        %v2542 = vsel %vm2533, %v2509, %v2257
        %v2543 = vsel %vm2533, %v2510, %v2259
        %v2544 = vsel %vm2533, %v2511, %v2261
        %v2545 = vsel %vm2533, %v2512, %v2263
        %v2546 = vsel %vm2533, %v2513, %v2265
        %v2547 = vsel %vm2533, %v2514, %v2267
        %v2548 = vsel %vm2533, %v2515, %v2269
        %v2549 = vsel %vm2533, %v2516, %v2271
        %v2550 = vsel %vm2533, %v2517, %v2273
        %v2551 = vsel %vm2533, %v2518, %v2275
        %v2552 = vsel %vm2533, %v2519, %v2277
        %v2553 = vsel %vm2533, %v2520, %v2279
        %v2554 = vsel %vm2533, %v2521, %v2281
        %v2555 = vsel %vm2533, %v2522, %v2283
        %v2556 = vsel %vm2533, %v2523, %v2285
        %v2557 = vsel %vm2533, %v2524, %v2287
        %v2558 = vsel %vm2533, %v2525, %v2289
        %v2559 = vsel %vm2533, %v2526, %v2291
        %v2560 = vsel %vm2533, %v2527, %v2293
        %v2561 = vsel %vm2533, %v2528, %v2295
        %v2562 = vsel %vm2533, %v2529, %v2297
        %v2563 = vsel %vm2533, %v2530, %v2299
        %v2564 = vsel %vm2533, %v2531, %v2301
        %v2565 = vsel %vm2533, %v2532, %v2303
        %v2566 = vpack.c.bf16 %v2535, %v2534
        %v2567 = vpack.c.bf16 %v1436, %v1435
        %v2568 = vpack.c.bf16 %v2537, %v2536
        %v2569 = vpack.c.bf16 %v1438, %v1437
        %v2570 = vpack.c.bf16 %v2539, %v2538
        %v2571 = vpack.c.bf16 %v1440, %v1439
        %v2572 = vpack.c.bf16 %v2541, %v2540
        %v2573 = vpack.c.bf16 %v1442, %v1441
        %v2574 = vpack.c.bf16 %v2543, %v2542
        %v2575 = vpack.c.bf16 %v1444, %v1443
        %v2576 = vpack.c.bf16 %v2545, %v2544
        %v2577 = vpack.c.bf16 %v1446, %v1445
        %v2578 = vpack.c.bf16 %v2547, %v2546
        %v2579 = vpack.c.bf16 %v1448, %v1447
        %v2580 = vpack.c.bf16 %v2549, %v2548
        %v2581 = vpack.c.bf16 %v1450, %v1449
        %v2582 = vpack.c.bf16 %v2551, %v2550
        %v2583 = vpack.c.bf16 %v1452, %v1451
        %v2584 = vpack.c.bf16 %v2553, %v2552
        %v2585 = vpack.c.bf16 %v1454, %v1453
        %v2586 = vpack.c.bf16 %v2555, %v2554
        %v2587 = vpack.c.bf16 %v1456, %v1455
        %v2588 = vpack.c.bf16 %v2557, %v2556
        %v2589 = vpack.c.bf16 %v1458, %v1457
        %v2590 = vpack.c.bf16 %v2559, %v2558
        %v2591 = vpack.c.bf16 %v1460, %v1459
        %v2592 = vpack.c.bf16 %v2561, %v2560
        %v2593 = vpack.c.bf16 %v1462, %v1461
        %v2594 = vpack.c.bf16 %v2563, %v2562
        %v2595 = vpack.c.bf16 %v1464, %v1463
        %v2596 = vpack.c.bf16 %v2565, %v2564
        %v2597 = vpack.c.bf16 %v1466, %v1465
        %v2598 = vld [vmem:[%s3] sm:$0xf]
        %v2599 = vld [vmem:[%s3 + $0x4] sm:$0xf]
        %v2600 = vld [vmem:[%s3 + $0x8] sm:$0xf]
        %v2601 = vld [vmem:[%s3 + $0xc] sm:$0xf]
        %v2602 = vld [vmem:[%s3 + $0x10] sm:$0xf]
        %v2603 = vld [vmem:[%s3 + $0x14] sm:$0xf]
        %v2604 = vld [vmem:[%s3 + $0x18] sm:$0xf]
        %v2605 = vld [vmem:[%s3 + $0x1c] sm:$0xf]
        %v2606 = vld [vmem:[%s3 + $0x20] sm:$0xf]
        %v2607 = vld [vmem:[%s3 + $0x24] sm:$0xf]
        %v2608 = vld [vmem:[%s3 + $0x28] sm:$0xf]
        %v2609 = vld [vmem:[%s3 + $0x2c] sm:$0xf]
        %v2610 = vld [vmem:[%s3 + $0x30] sm:$0xf]
        %v2611 = vld [vmem:[%s3 + $0x34] sm:$0xf]
        %v2612 = vld [vmem:[%s3 + $0x38] sm:$0xf]
        %v2613 = vld [vmem:[%s3 + $0x3c] sm:$0xf]
        %v2614 = vld [vmem:[%s3 + $0x40] sm:$0xf]
        %v2615 = vld [vmem:[%s3 + $0x44] sm:$0xf]
        %v2616 = vld [vmem:[%s4] sm:$0x1]
        %v2618 = vperm.slane %v2616, 0
        %v2638 = vunpack.c.l.b16 %v2598
        %v2639 = vunpack.c.l.b16 %v2599
        %v2640 = vunpack.c.l.b16 %v2600
        %v2641 = vunpack.c.l.b16 %v2601
        %v2642 = vunpack.c.l.b16 %v2602
        %v2643 = vunpack.c.l.b16 %v2603
        %v2644 = vunpack.c.l.b16 %v2604
        %v2645 = vunpack.c.l.b16 %v2605
        %v2646 = vunpack.c.l.b16 %v2606
        %v2647 = vunpack.c.l.b16 %v2607
        %v2648 = vunpack.c.l.b16 %v2608
        %v2649 = vunpack.c.l.b16 %v2609
        %v2650 = vunpack.c.l.b16 %v2610
        %v2651 = vunpack.c.l.b16 %v2611
        %v2652 = vunpack.c.l.b16 %v2612
        %v2653 = vunpack.c.l.b16 %v2613
        %v2654 = vunpack.c.l.b16 %v2614
        %v2655 = vunpack.c.l.b16 %v2615
        %v2656 = vpack.c.b16 %v2639, %v2638
        %v2657 = vpack.c.b16 %v2641, %v2640
        %v2658 = vpack.c.b16 %v2643, %v2642
        %v2659 = vpack.c.b16 %v2645, %v2644
        %v2660 = vpack.c.b16 %v2647, %v2646
        %v2661 = vpack.c.b16 %v2649, %v2648
        %v2662 = vpack.c.b16 %v2651, %v2650
        %v2663 = vpack.c.b16 %v2653, %v2652
        %v2664 = vpack.c.b16 %v2655, %v2654
        %v2675 = vsel %vm2336, %v2567, 0
        %v2678 = vsel %vm2336, %v2569, 0
        %v2681 = vsel %vm2336, %v2571, 0
        %v2684 = vsel %vm2336, %v2573, 0
        %v2687 = vsel %vm2336, %v2575, 0
        %v2690 = vsel %vm2336, %v2577, 0
        %v2693 = vsel %vm2336, %v2579, 0
        %v2696 = vsel %vm2336, %v2581, 0
        %v2699 = vsel %vm2336, %v2583, 0
        %v2702 = vsel %vm2336, %v2585, 0
        %v2705 = vsel %vm2336, %v2587, 0
        %v2708 = vsel %vm2336, %v2589, 0
        %v2711 = vsel %vm2336, %v2591, 0
        %v2714 = vsel %vm2336, %v2593, 0
        %v2717 = vsel %vm2336, %v2595, 0
        %v2720 = vsel %vm2336, %v2597, 0
        %2722 = vmatpush.bf16.msra.mxu0 %v2663
        %2723 = vmatpush.bf16.msra.mxu0 %v2662
        %2724 = vmatpush.bf16.msra.mxu0 %v2661
        %2725 = vmatpush.bf16.msra.mxu0 %v2660
        %2726 = vmatpush.bf16.msra.mxu0 %v2659
        %2727 = vmatpush.bf16.msra.mxu0 %v2658
        %2728 = vmatpush.bf16.msra.mxu0 %v2657
        %2729 = vmatpush.bf16.msra.mxu0 %v2656
        %2730 = vmatmul.bf16.gmra.mxu0 %v2566
        %v2731 = vpop.f32.mrf.mxu0
        %v2732 = vadd.f32 %v2618, %v2731
        %v2733 = vpop.f32.mrf.mxu0
        %v2734 = vadd.f32 %v2618, %v2733
        %2735 = vmatmul.bf16.gmra.mxu0 %v2568
        %v2736 = vpop.f32.mrf.mxu0
        %v2737 = vadd.f32 %v2618, %v2736
        %v2738 = vpop.f32.mrf.mxu0
        %v2739 = vadd.f32 %v2618, %v2738
        %2740 = vmatmul.bf16.gmra.mxu0 %v2570
        %v2741 = vpop.f32.mrf.mxu0
        %v2742 = vadd.f32 %v2618, %v2741
        %v2743 = vpop.f32.mrf.mxu0
        %v2744 = vadd.f32 %v2618, %v2743
        %2745 = vmatmul.bf16.gmra.mxu0 %v2572
        %v2746 = vpop.f32.mrf.mxu0
        %v2747 = vadd.f32 %v2618, %v2746
        %v2748 = vpop.f32.mrf.mxu0
        %v2749 = vadd.f32 %v2618, %v2748
        %2750 = vmatmul.bf16.gmra.mxu0 %v2574
        %v2751 = vpop.f32.mrf.mxu0
        %v2752 = vadd.f32 %v2618, %v2751
        %v2753 = vpop.f32.mrf.mxu0
        %v2754 = vadd.f32 %v2618, %v2753
        %2755 = vmatmul.bf16.gmra.mxu0 %v2576
        %v2756 = vpop.f32.mrf.mxu0
        %v2757 = vadd.f32 %v2618, %v2756
        %v2758 = vpop.f32.mrf.mxu0
        %v2759 = vadd.f32 %v2618, %v2758
        %2760 = vmatmul.bf16.gmra.mxu0 %v2578
        %v2761 = vpop.f32.mrf.mxu0
        %v2762 = vadd.f32 %v2618, %v2761
        %v2763 = vpop.f32.mrf.mxu0
        %v2764 = vadd.f32 %v2618, %v2763
        %2765 = vmatmul.bf16.gmra.mxu0 %v2580
        %v2766 = vpop.f32.mrf.mxu0
        %v2767 = vadd.f32 %v2618, %v2766
        %v2768 = vpop.f32.mrf.mxu0
        %v2769 = vadd.f32 %v2618, %v2768
        %2770 = vmatmul.bf16.gmra.mxu0 %v2582
        %v2771 = vpop.f32.mrf.mxu0
        %v2772 = vadd.f32 %v2618, %v2771
        %v2773 = vpop.f32.mrf.mxu0
        %v2774 = vadd.f32 %v2618, %v2773
        %2775 = vmatmul.bf16.gmra.mxu0 %v2584
        %v2776 = vpop.f32.mrf.mxu0
        %v2777 = vadd.f32 %v2618, %v2776
        %v2778 = vpop.f32.mrf.mxu0
        %v2779 = vadd.f32 %v2618, %v2778
        %2780 = vmatmul.bf16.gmra.mxu0 %v2586
        %v2781 = vpop.f32.mrf.mxu0
        %v2782 = vadd.f32 %v2618, %v2781
        %v2783 = vpop.f32.mrf.mxu0
        %v2784 = vadd.f32 %v2618, %v2783
        %2785 = vmatmul.bf16.gmra.mxu0 %v2588
        %v2786 = vpop.f32.mrf.mxu0
        %v2787 = vadd.f32 %v2618, %v2786
        %v2788 = vpop.f32.mrf.mxu0
        %v2789 = vadd.f32 %v2618, %v2788
        %2790 = vmatmul.bf16.gmra.mxu0 %v2590
        %v2791 = vpop.f32.mrf.mxu0
        %v2792 = vadd.f32 %v2618, %v2791
        %v2793 = vpop.f32.mrf.mxu0
        %v2794 = vadd.f32 %v2618, %v2793
        %2795 = vmatmul.bf16.gmra.mxu0 %v2592
        %v2796 = vpop.f32.mrf.mxu0
        %v2797 = vadd.f32 %v2618, %v2796
        %v2798 = vpop.f32.mrf.mxu0
        %v2799 = vadd.f32 %v2618, %v2798
        %2800 = vmatmul.bf16.gmra.mxu0 %v2594
        %v2801 = vpop.f32.mrf.mxu0
        %v2802 = vadd.f32 %v2618, %v2801
        %v2803 = vpop.f32.mrf.mxu0
        %v2804 = vadd.f32 %v2618, %v2803
        %2805 = vmatmul.bf16.gmra.mxu0 %v2596
        %v2806 = vpop.f32.mrf.mxu0
        %v2807 = vadd.f32 %v2618, %v2806
        %v2808 = vpop.f32.mrf.mxu0
        %v2809 = vadd.f32 %v2618, %v2808
        %2810 = vdwg.mxu0
        %2811 = vmatpush.bf16.msra.mxu0 0
        %2812 = vmatpush.bf16.msra.mxu0 0
        %2813 = vmatpush.bf16.msra.mxu0 0
        %2814 = vmatpush.bf16.msra.mxu0 0
        %2815 = vmatpush.bf16.msra.mxu0 0
        %2816 = vmatpush.bf16.msra.mxu0 0
        %2817 = vmatpush.bf16.msra.mxu0 0
        %2818 = vmatpush.bf16.msra.mxu0 %v2664
        %2819 = vmatmul.bf16.gmra.mxu0 %v2675
        %v2820 = vpop.f32.mrf.mxu0
        %v2821 = vadd.f32 %v2732, %v2820
        %v2822 = vpop.f32.mrf.mxu0
        %v2823 = vadd.f32 %v2734, %v2822
        %2824 = vmatmul.bf16.gmra.mxu0 %v2678
        %v2825 = vpop.f32.mrf.mxu0
        %v2826 = vadd.f32 %v2737, %v2825
        %v2827 = vpop.f32.mrf.mxu0
        %v2828 = vadd.f32 %v2739, %v2827
        %2829 = vmatmul.bf16.gmra.mxu0 %v2681
        %v2830 = vpop.f32.mrf.mxu0
        %v2831 = vadd.f32 %v2742, %v2830
        %v2832 = vpop.f32.mrf.mxu0
        %v2833 = vadd.f32 %v2744, %v2832
        %2834 = vmatmul.bf16.gmra.mxu0 %v2684
        %v2835 = vpop.f32.mrf.mxu0
        %v2836 = vadd.f32 %v2747, %v2835
        %v2837 = vpop.f32.mrf.mxu0
        %v2838 = vadd.f32 %v2749, %v2837
        %2839 = vmatmul.bf16.gmra.mxu0 %v2687
        %v2840 = vpop.f32.mrf.mxu0
        %v2841 = vadd.f32 %v2752, %v2840
        %v2842 = vpop.f32.mrf.mxu0
        %v2843 = vadd.f32 %v2754, %v2842
        %2844 = vmatmul.bf16.gmra.mxu0 %v2690
        %v2845 = vpop.f32.mrf.mxu0
        %v2846 = vadd.f32 %v2757, %v2845
        %v2847 = vpop.f32.mrf.mxu0
        %v2848 = vadd.f32 %v2759, %v2847
        %2849 = vmatmul.bf16.gmra.mxu0 %v2693
        %v2850 = vpop.f32.mrf.mxu0
        %v2851 = vadd.f32 %v2762, %v2850
        %v2852 = vpop.f32.mrf.mxu0
        %v2853 = vadd.f32 %v2764, %v2852
        %2854 = vmatmul.bf16.gmra.mxu0 %v2696
        %v2855 = vpop.f32.mrf.mxu0
        %v2856 = vadd.f32 %v2767, %v2855
        %v2857 = vpop.f32.mrf.mxu0
        %v2858 = vadd.f32 %v2769, %v2857
        %2859 = vmatmul.bf16.gmra.mxu0 %v2699
        %v2860 = vpop.f32.mrf.mxu0
        %v2861 = vadd.f32 %v2772, %v2860
        %v2862 = vpop.f32.mrf.mxu0
        %v2863 = vadd.f32 %v2774, %v2862
        %2864 = vmatmul.bf16.gmra.mxu0 %v2702
        %v2865 = vpop.f32.mrf.mxu0
        %v2866 = vadd.f32 %v2777, %v2865
        %v2867 = vpop.f32.mrf.mxu0
        %v2868 = vadd.f32 %v2779, %v2867
        %2869 = vmatmul.bf16.gmra.mxu0 %v2705
        %v2870 = vpop.f32.mrf.mxu0
        %v2871 = vadd.f32 %v2782, %v2870
        %v2872 = vpop.f32.mrf.mxu0
        %v2873 = vadd.f32 %v2784, %v2872
        %2874 = vmatmul.bf16.gmra.mxu0 %v2708
        %v2875 = vpop.f32.mrf.mxu0
        %v2876 = vadd.f32 %v2787, %v2875
        %v2877 = vpop.f32.mrf.mxu0
        %v2878 = vadd.f32 %v2789, %v2877
        %2879 = vmatmul.bf16.gmra.mxu0 %v2711
        %v2880 = vpop.f32.mrf.mxu0
        %v2881 = vadd.f32 %v2792, %v2880
        %v2882 = vpop.f32.mrf.mxu0
        %v2883 = vadd.f32 %v2794, %v2882
        %2884 = vmatmul.bf16.gmra.mxu0 %v2714
        %v2885 = vpop.f32.mrf.mxu0
        %v2886 = vadd.f32 %v2797, %v2885
        %v2887 = vpop.f32.mrf.mxu0
        %v2888 = vadd.f32 %v2799, %v2887
        %2889 = vmatmul.bf16.gmra.mxu0 %v2717
        %v2890 = vpop.f32.mrf.mxu0
        %v2891 = vadd.f32 %v2802, %v2890
        %v2892 = vpop.f32.mrf.mxu0
        %v2893 = vadd.f32 %v2804, %v2892
        %2894 = vmatmul.bf16.gmra.mxu0 %v2720
        %v2895 = vpop.f32.mrf.mxu0
        %v2896 = vadd.f32 %v2807, %v2895
        %v2897 = vpop.f32.mrf.mxu0
        %v2898 = vadd.f32 %v2809, %v2897
        %2899 = vdwg.mxu0
        %v2900 = vmax.f32 %v2821, 0.0
        %v2901 = vmax.f32 %v2823, 0.0
        %v2902 = vmax.f32 %v2826, 0.0
        %v2903 = vmax.f32 %v2828, 0.0
        %v2904 = vmax.f32 %v2831, 0.0
        %v2905 = vmax.f32 %v2833, 0.0
        %v2906 = vmax.f32 %v2836, 0.0
        %v2907 = vmax.f32 %v2838, 0.0
        %v2908 = vmax.f32 %v2841, 0.0
        %v2909 = vmax.f32 %v2843, 0.0
        %v2910 = vmax.f32 %v2846, 0.0
        %v2911 = vmax.f32 %v2848, 0.0
        %v2912 = vmax.f32 %v2851, 0.0
        %v2913 = vmax.f32 %v2853, 0.0
        %v2914 = vmax.f32 %v2856, 0.0
        %v2915 = vmax.f32 %v2858, 0.0
        %v2916 = vmax.f32 %v2861, 0.0
        %v2917 = vmax.f32 %v2863, 0.0
        %v2918 = vmax.f32 %v2866, 0.0
        %v2919 = vmax.f32 %v2868, 0.0
        %v2920 = vmax.f32 %v2871, 0.0
        %v2921 = vmax.f32 %v2873, 0.0
        %v2922 = vmax.f32 %v2876, 0.0
        %v2923 = vmax.f32 %v2878, 0.0
        %v2924 = vmax.f32 %v2881, 0.0
        %v2925 = vmax.f32 %v2883, 0.0
        %v2926 = vmax.f32 %v2886, 0.0
        %v2927 = vmax.f32 %v2888, 0.0
        %v2928 = vmax.f32 %v2891, 0.0
        %v2929 = vmax.f32 %v2893, 0.0
        %v2930 = vmax.f32 %v2896, 0.0
        %v2931 = vmax.f32 %v2898, 0.0
        %2932 = vst [vmem:[%s217] sm:$0xff] %v2900
        %2933 = vst [vmem:[%s217 + $0x8] sm:$0xff] %v2901
        %2934 = vst [vmem:[%s217 + $0x10] sm:$0xff] %v2902
        %2935 = vst [vmem:[%s217 + $0x18] sm:$0xff] %v2903
        %2936 = vst [vmem:[%s217 + $0x20] sm:$0xff] %v2904
        %2937 = vst [vmem:[%s217 + $0x28] sm:$0xff] %v2905
        %2938 = vst [vmem:[%s217 + $0x30] sm:$0xff] %v2906
        %2939 = vst [vmem:[%s217 + $0x38] sm:$0xff] %v2907
        %2940 = vst [vmem:[%s217 + $0x40] sm:$0xff] %v2908
        %2941 = vst [vmem:[%s217 + $0x48] sm:$0xff] %v2909
        %2942 = vst [vmem:[%s217 + $0x50] sm:$0xff] %v2910
        %2943 = vst [vmem:[%s217 + $0x58] sm:$0xff] %v2911
        %2944 = vst [vmem:[%s217 + $0x60] sm:$0xff] %v2912
        %2945 = vst [vmem:[%s217 + $0x68] sm:$0xff] %v2913
        %2946 = vst [vmem:[%s217 + $0x70] sm:$0xff] %v2914
        %2947 = vst [vmem:[%s217 + $0x78] sm:$0xff] %v2915
        %2948 = vst [vmem:[%s217 + $0x80] sm:$0xff] %v2916
        %2949 = vst [vmem:[%s217 + $0x88] sm:$0xff] %v2917
        %2950 = vst [vmem:[%s217 + $0x90] sm:$0xff] %v2918
        %2951 = vst [vmem:[%s217 + $0x98] sm:$0xff] %v2919
        %2952 = vst [vmem:[%s217 + $0xa0] sm:$0xff] %v2920
        %2953 = vst [vmem:[%s217 + $0xa8] sm:$0xff] %v2921
        %2954 = vst [vmem:[%s217 + $0xb0] sm:$0xff] %v2922
        %2955 = vst [vmem:[%s217 + $0xb8] sm:$0xff] %v2923
        %2956 = vst [vmem:[%s217 + $0xc0] sm:$0xff] %v2924
        %2957 = vst [vmem:[%s217 + $0xc8] sm:$0xff] %v2925
        %2958 = vst [vmem:[%s217 + $0xd0] sm:$0xff] %v2926
        %2959 = vst [vmem:[%s217 + $0xd8] sm:$0xff] %v2927
        %2960 = vst [vmem:[%s217 + $0xe0] sm:$0xff] %v2928
        %2961 = vst [vmem:[%s217 + $0xe8] sm:$0xff] %v2929
        %2962 = vst [vmem:[%s217 + $0xf0] sm:$0xff] %v2930
        %2963 = vst [vmem:[%s217 + $0xf8] sm:$0xff] %v2931
        %s2964 = sand.u32 %s137, 1
        %s2965 = scalar_lea.sflag [#allocation3], %s2964
        %s2966 = sand.u32 %s137, 1
        %s2967 = smul.addr %s2966, 256
        %s2968 = scalar_lea.vmem [#allocation2], %s2967
        // Predicated region
        $region41: #{fire_block.1} parent=39 // pred_check
          %p2969 = pneg %p147
        $region42: #{fire_block.1} parent=39 // pred_check_branch
          %2971 = sbr.rel (%p2969) target = $region44
        $region43: #{fire_block.1} parent=39 // pred_region
          %2973 = vsyncadd %s2965, 0
          %s2974 = smul.addr %s19, 32
          %s2975 = smul.addr %s2974, 8
          %s2976 = scalar_lea.hbm %s5, %s2975
          %s2977 = sshll.u32 %s2968, 4
          %s2978 = int_to_ptr.vmem [resolvable:$true] %s2977
          %s2979 = sshll.u32 %s2976, 4
          %s2980 = int_to_ptr.hbm [resolvable:$true] %s2979
          %2985 = dma.vmem_to_hbm [thread:$0]  %s2978, 4096, %s2980, %s2965, 128, 128, 8
        $region44: #{fire_block.1} parent=39 // pred_fallthru
          _
      $region40: #{fire_block.1} parent=5 // pred_fallthru
        _
      %p2986 = scmp.le.s32.totalorder 2, %s14
      // Predicated region
      $region45: #{fire_block.1} parent=5 // pred_check
        %p2987 = pneg %p2986
      $region46: #{fire_block.1} parent=5 // pred_check_branch
        %2989 = sbr.rel (%p2987) target = $region48
      $region47: #{fire_block.1} parent=5 // pred_region
        %s2990 = ssub.s32 %s14, 2
        // Predicated region
        $region49: #{fire_block.1} parent=47 // pred_check
          %p2991 = pneg %p153
        $region50: #{fire_block.1} parent=47 // pred_check_branch
          %2993 = sbr.rel (%p2991) target = $region52
        $region51: #{fire_block.1} parent=47 // pred_region
          %s2994 = sand.u32 %s138, 1
          %s2995 = scalar_lea.sflag [#allocation3], %s2994
          %s2996 = sand.u32 %s138, 1
          %s2997 = smul.addr %s2996, 256
          %s2998 = scalar_lea.vmem [#allocation2], %s2997
          %3000 = dma.done %s2995, 4096
        $region52: #{fire_block.1} parent=47 // pred_fallthru
          _
      $region48: #{fire_block.1} parent=5 // pred_fallthru
        _
    $region6: #{fire_block.1} parent=1 // loop_footer
      %s18 = sadd.s32 1, %s14
    $region7: #{fire_block.1} parent=1 // loop_footer_branch
      %13 = sbr.rel target = $region3
    $region8: #{fire_block.1} parent=1 // loop_exit
      _
    %3001 = vsyncpa [#allocation3], 1
    %s3002 = scalar_lea.sflag [#allocation3], 1
    %3003 = vsyncpa %s3002, 1

</llo_original>
